<compile_context>
chip_gen: v7x
topology: tpu7x:2x2x1
jax: 0.10.0
libtpu: 0.0.40
codegen_flags: <defaults>
</compile_context>

<pallas_src>
import functools

import jax
import jax.numpy as jnp
from jax.experimental import pallas as pl
from jax.experimental.pallas import tpu as pltpu

_EPS = 1e-5  # InstanceNorm2d default eps


def _fused_kernel(x_ref, w_ref, o_ref, patch_ref, *, kh, kw, pad, W, Ho, B,
                  is_norm):
    # x_ref:     (1, B, Cin, L)        H-padded flat rows, L = (H+2p)*W + 2p
    # w_ref:     (1, Cout, kh*kw*Cin)  bf16 weights, K ordered (tap, cin)
    # o_ref:     (1, B, Cout, HW)      HW = Ho*W (lane-dense, NCHW order)
    # patch_ref: (kh*kw*Cin, B*HW)     f32 VMEM scratch (im2col patch)
    cin = x_ref.shape[2]
    hw = Ho * W

    # W-boundary wrap masks: only kw distinct ones -- hoisted out of the tap loop.
    col = jax.lax.broadcasted_iota(jnp.int32, (1, hw), 1) % W
    masks = []
    for j in range(kw):
        lo = max(0, pad - j)
        hi = W - max(0, j - pad)
        masks.append(None if (lo == 0 and hi == W) else (col >= lo) & (col < hi))

    # Build the (kh*kw*Cin, B*HW) patch in VMEM. Each 3x3 tap is a contiguous
    # static slice of the flat row (offset i*W + j); the wrap-around columns
    # introduced by slicing across row boundaries are zeroed via masks[j].
    for b in range(B):
        for i in range(kh):
            for j in range(kw):
                s = i * W + j
                xs = x_ref[0, b, :, s:s + hw]                    # (Cin, HW)
                if masks[j] is not None:
                    xs = jnp.where(masks[j], xs, 0.0)
                t = i * kw + j
                patch_ref[t * cin:(t + 1) * cin, b * hw:(b + 1) * hw] = xs

    # ONE MXU matmul per branch: (Cout, 9*Cin) x (9*Cin, B*HW),
    # bf16 operands, f32 accumulation.
    y_all = jnp.dot(w_ref[0], patch_ref[...].astype(jnp.bfloat16),
                    preferred_element_type=jnp.float32)          # (Cout, B*HW)

    inv_hw = 1.0 / hw
    for b in range(B):
        y = y_all[:, b * hw:(b + 1) * hw]                        # (Cout, HW)
        if is_norm:
            # InstanceNorm2d (affine=False): per-(batch, channel) norm over
            # spatial dims, biased variance, eps=1e-5, all in f32.
            mean = jnp.sum(y, axis=1, keepdims=True) * inv_hw
            d = y - mean
            var = jnp.sum(d * d, axis=1, keepdims=True) * inv_hw
            y = d * jax.lax.rsqrt(var + _EPS)
        o_ref[0, b] = y.astype(o_ref.dtype)                      # dense store


def complex_conv(x_complex, w_real, w_imag, *, padding, is_norm=True):
    """Forward pass of complexConv.

    x_complex: (B, Cin, H, W) complex64
    w_real, w_imag: (Cout, Cin, kh, kw) float32 (bias=False, groups=1)
    returns: (B, Cout, Ho, Wo) complex64
    """
    Cout, Cin, kh, kw = w_real.shape
    B, Cin_x, H, W = x_complex.shape
    assert Cin_x == Cin
    # Fused fast path assumes "same"-width output (odd kw with pad=(kw-1)//2),
    # which is how the module is used (kernel_size=3, padding=1).
    # TODO(synk): general (non-"same"-width) padding needs a per-row patch path.
    assert 2 * padding == kw - 1, "requires 2*padding == kernel_size - 1"

    p = padding
    Hp = H + 2 * p
    Ho = Hp - kh + 1
    Wo = W
    HW = Ho * Wo
    L = Hp * W + 2 * p
    K = kh * kw * Cin

    # --- single-pass plain-JAX prep (ONE pad, no im2col) ---
    # Padding p rows of H plus the +/-p flat-row guard is a single pad of
    # p*(W+1) zeros on each side of the flattened H*W row.
    x_parts = jnp.stack([jnp.real(x_complex), jnp.imag(x_complex)],
                        axis=0).astype(jnp.float32)               # (2,B,Cin,H,W)
    x_flat = jnp.pad(x_parts.reshape(2, B, Cin, H * W),
                     ((0, 0), (0, 0), (0, 0),
                      (p * (W + 1), p * (W + 1))))                # (2,B,Cin,L)

    # Weights: (2, Cout, Cin, kh, kw) -> (2, Cout, kh*kw*Cin), K ordered
    # (tap, cin) to match the patch rows; bf16 matmul operands.
    w_all = jnp.stack([w_real, w_imag], axis=0)
    w_k = w_all.transpose(0, 1, 3, 4, 2).reshape(2, Cout, K).astype(jnp.bfloat16)

    kernel = functools.partial(_fused_kernel, kh=kh, kw=kw, pad=p, W=W, Ho=Ho,
                               B=B, is_norm=is_norm)

    flops = 2 * 2 * B * Cout * HW * K
    bytes_accessed = (2 * B * Cin * L) * 4 + (2 * Cout * K) * 2 \
        + (2 * B * Cout * HW) * 4

    out = pl.pallas_call(
        kernel,
        out_shape=jax.ShapeDtypeStruct((2, B, Cout, HW), jnp.float32),
        grid=(2,),  # real/imag branch only; batch folded into the block
        in_specs=[
            pl.BlockSpec((1, B, Cin, L), lambda br: (br, 0, 0, 0)),
            pl.BlockSpec((1, Cout, K), lambda br: (br, 0, 0)),
        ],
        out_specs=pl.BlockSpec((1, B, Cout, HW), lambda br: (br, 0, 0, 0)),
        scratch_shapes=[pltpu.VMEM((K, B * HW), jnp.float32)],
        compiler_params=pltpu.CompilerParams(
            dimension_semantics=("parallel",)),
        cost_estimate=pl.CostEstimate(
            flops=flops,
            transcendentals=(2 * B * Cout) if is_norm else 0,
            bytes_accessed=bytes_accessed),
    )(x_flat, w_k)

    out = out.reshape(2, B, Cout, Ho, Wo)   # free reshape: already NCHW order
    return jax.lax.complex(out[0], out[1])


def _reference(x, w_r, w_i, padding, is_norm):
    """Pure-JAX f32 reference (conv + InstanceNorm2d), for correctness check."""
    def branch(xr, w):
        y = jax.lax.conv_general_dilated(
            xr, w, window_strides=(1, 1),
            padding=[(padding, padding), (padding, padding)],
            dimension_numbers=("NCHW", "OIHW", "NCHW"),
            precision=jax.lax.Precision.HIGHEST)
        if is_norm:
            mean = y.mean(axis=(2, 3), keepdims=True)
            var = jnp.square(y - mean).mean(axis=(2, 3), keepdims=True)
            y = (y - mean) * jax.lax.rsqrt(var + _EPS)
        return y
    return jax.lax.complex(branch(jnp.real(x), w_r), branch(jnp.imag(x), w_i))


if __name__ == "__main__":
    # Small shapes consistent with the module: B=2, Cin=4, Cout=8, H=W=16,
    # kernel_size=3, padding=1 ("same" spatial size).
    B, Cin, Cout, H, W, KS, PAD = 2, 4, 8, 16, 16, 3, 1

    key = jax.random.PRNGKey(0)
    k1, k2, k3, k4 = jax.random.split(key, 4)
    x_real = jax.random.normal(k1, (B, Cin, H, W), dtype=jnp.float32)
    x_imag = jax.random.normal(k2, (B, Cin, H, W), dtype=jnp.float32)
    x = jax.lax.complex(x_real, x_imag)

    w_real = 0.1 * jax.random.normal(k3, (Cout, Cin, KS, KS), dtype=jnp.float32)
    w_imag = 0.1 * jax.random.normal(k4, (Cout, Cin, KS, KS), dtype=jnp.float32)

    fwd = jax.jit(functools.partial(complex_conv, padding=PAD, is_norm=True))
    out = jax.block_until_ready(fwd(x, w_real, w_imag))

    assert out.shape == (B, Cout, H, W)
    assert out.dtype == jnp.complex64

    ref = jax.block_until_ready(_reference(x, w_real, w_imag, PAD, True))
    # bf16 matmul operands (f32 accumulation) -> tolerance accordingly.
    assert jnp.allclose(jnp.real(out), jnp.real(ref), atol=2e-2, rtol=2e-2)
    assert jnp.allclose(jnp.imag(out), jnp.imag(ref), atol=2e-2, rtol=2e-2)

    print("KERNEL_OK")
</pallas_src>

<mosaic_0001>
module attributes {stable_mosaic.version = 11 : i64} {
  func.func @_fused_kernel(%arg0: i32, %arg1: memref<1x2x4x290xf32, #tpu.memory_space<vmem>>, %arg2: memref<1x8x36xbf16, #tpu.memory_space<vmem>>, %arg3: memref<1x2x8x256xf32, #tpu.memory_space<vmem>>, %arg4: memref<36x512xf32, #tpu.memory_space<vmem>>) attributes {dimension_semantics = [#tpu.dimension_semantics<parallel>], iteration_bounds = array<i64: 2>, scalar_prefetch = 0 : i64, scratch_operands = 1 : i64, tpu.core_type = #tpu.core_type<tc>, window_params = [{transform_indices = @transform_0, window_bounds = array<i64: 1, 2, 4, 290>}, {transform_indices = @transform_1, window_bounds = array<i64: 1, 8, 36>}, {transform_indices = @transform_2, window_bounds = array<i64: 1, 2, 8, 256>}]} {
    %0 = tpu.iota {dimensions = array<i32: 1>} : vector<1x256xi32>
    %c16_i32 = arith.constant 16 : i32
    %c0_i32 = arith.constant 0 : i32
    %1 = arith.cmpi eq, %c16_i32, %c0_i32 : i32
    %c1_i32 = arith.constant 1 : i32
    %2 = arith.select %1, %c1_i32, %c16_i32 : i32
    %3 = vector.broadcast %2 : i32 to vector<1x256xi32>
    %4 = arith.remsi %0, %3 : vector<1x256xi32>
    %c0_i32_0 = arith.constant 0 : i32
    %5 = vector.broadcast %c0_i32_0 : i32 to vector<1x256xi32>
    %6 = arith.cmpi ne, %4, %5 : vector<1x256xi32>
    %c0_i32_1 = arith.constant 0 : i32
    %7 = vector.broadcast %c0_i32_1 : i32 to vector<1x256xi32>
    %8 = arith.cmpi slt, %4, %7 : vector<1x256xi32>
    %c0_i32_2 = arith.constant 0 : i32
    %9 = arith.cmpi slt, %2, %c0_i32_2 : i32
    %10 = vector.broadcast %9 : i1 to vector<1x256xi1>
    %11 = vector.broadcast %10 : vector<1x256xi1> to vector<1x256xi1>
    %12 = arith.xori %8, %11 : vector<1x256xi1>
    %13 = arith.andi %12, %6 : vector<1x256xi1>
    %14 = vector.broadcast %2 : i32 to vector<1x256xi32>
    %15 = arith.addi %4, %14 : vector<1x256xi32>
    %16 = arith.select %13, %15, %4 : vector<1x256xi1>, vector<1x256xi32>
    %c1_i32_3 = arith.constant 1 : i32
    %17 = vector.broadcast %c1_i32_3 : i32 to vector<1x256xi32>
    %18 = arith.cmpi sge, %16, %17 : vector<1x256xi32>
    %c16_i32_4 = arith.constant 16 : i32
    %19 = vector.broadcast %c16_i32_4 : i32 to vector<1x256xi32>
    %20 = arith.cmpi slt, %16, %19 : vector<1x256xi32>
    %21 = arith.andi %18, %20 : vector<1x256xi1>
    %c0_i32_5 = arith.constant 0 : i32
    %22 = vector.broadcast %c0_i32_5 : i32 to vector<1x256xi32>
    %23 = arith.cmpi sge, %16, %22 : vector<1x256xi32>
    %c15_i32 = arith.constant 15 : i32
    %24 = vector.broadcast %c15_i32 : i32 to vector<1x256xi32>
    %25 = arith.cmpi slt, %16, %24 : vector<1x256xi32>
    %26 = arith.andi %23, %25 : vector<1x256xi1>
    %c0 = arith.constant 0 : index
    %c0_6 = arith.constant 0 : index
    %c0_7 = arith.constant 0 : index
    %c0_8 = arith.constant 0 : index
    %27 = vector.load %arg1[%c0, %c0_6, %c0_7, %c0_8] : memref<1x2x4x290xf32, #tpu.memory_space<vmem>>, vector<1x1x4x256xf32>
    %28 = vector.shape_cast %27 : vector<1x1x4x256xf32> to vector<4x256xf32>
    %cst = arith.constant 0.000000e+00 : f32
    %29 = vector.shape_cast %21 : vector<1x256xi1> to vector<1x256xi1>
    %30 = vector.broadcast %29 : vector<1x256xi1> to vector<4x256xi1>
    %31 = vector.broadcast %cst : f32 to vector<4x256xf32>
    %32 = arith.select %30, %28, %31 : vector<4x256xi1>, vector<4x256xf32>
    %c0_9 = arith.constant 0 : index
    %c0_10 = arith.constant 0 : index
    %33 = vector.load %arg4[%c0_9, %c0_10] : memref<36x512xf32, #tpu.memory_space<vmem>>, vector<4x256xf32>
    tpu.vector_store %arg4[%c0_9, %c0_10], %32 {strides = array<i32>} : memref<36x512xf32, #tpu.memory_space<vmem>>, vector<4x256xf32>,
    %c0_11 = arith.constant 0 : index
    %c0_12 = arith.constant 0 : index
    %c0_13 = arith.constant 0 : index
    %c1 = arith.constant 1 : index
    %34 = vector.load %arg1[%c0_11, %c0_12, %c0_13, %c1] : memref<1x2x4x290xf32, #tpu.memory_space<vmem>>, vector<1x1x4x256xf32>
    %35 = vector.shape_cast %34 : vector<1x1x4x256xf32> to vector<4x256xf32>
    %c4 = arith.constant 4 : index
    %c0_14 = arith.constant 0 : index
    %36 = vector.load %arg4[%c4, %c0_14] : memref<36x512xf32, #tpu.memory_space<vmem>>, vector<4x256xf32>
    tpu.vector_store %arg4[%c4, %c0_14], %35 {strides = array<i32>} : memref<36x512xf32, #tpu.memory_space<vmem>>, vector<4x256xf32>,
    %c0_15 = arith.constant 0 : index
    %c0_16 = arith.constant 0 : index
    %c0_17 = arith.constant 0 : index
    %c2 = arith.constant 2 : index
    %37 = vector.load %arg1[%c0_15, %c0_16, %c0_17, %c2] : memref<1x2x4x290xf32, #tpu.memory_space<vmem>>, vector<1x1x4x256xf32>
    %38 = vector.shape_cast %37 : vector<1x1x4x256xf32> to vector<4x256xf32>
    %cst_18 = arith.constant 0.000000e+00 : f32
    %39 = vector.shape_cast %26 : vector<1x256xi1> to vector<1x256xi1>
    %40 = vector.broadcast %39 : vector<1x256xi1> to vector<4x256xi1>
    %41 = vector.broadcast %cst_18 : f32 to vector<4x256xf32>
    %42 = arith.select %40, %38, %41 : vector<4x256xi1>, vector<4x256xf32>
    %c8 = arith.constant 8 : index
    %c0_19 = arith.constant 0 : index
    %43 = vector.load %arg4[%c8, %c0_19] : memref<36x512xf32, #tpu.memory_space<vmem>>, vector<4x256xf32>
    tpu.vector_store %arg4[%c8, %c0_19], %42 {strides = array<i32>} : memref<36x512xf32, #tpu.memory_space<vmem>>, vector<4x256xf32>,
    %c0_20 = arith.constant 0 : index
    %c0_21 = arith.constant 0 : index
    %c0_22 = arith.constant 0 : index
    %c16 = arith.constant 16 : index
    %44 = vector.load %arg1[%c0_20, %c0_21, %c0_22, %c16] : memref<1x2x4x290xf32, #tpu.memory_space<vmem>>, vector<1x1x4x256xf32>
    %45 = vector.shape_cast %44 : vector<1x1x4x256xf32> to vector<4x256xf32>
    %cst_23 = arith.constant 0.000000e+00 : f32
    %46 = vector.shape_cast %21 : vector<1x256xi1> to vector<1x256xi1>
    %47 = vector.broadcast %46 : vector<1x256xi1> to vector<4x256xi1>
    %48 = vector.broadcast %cst_23 : f32 to vector<4x256xf32>
    %49 = arith.select %47, %45, %48 : vector<4x256xi1>, vector<4x256xf32>
    %c12 = arith.constant 12 : index
    %c0_24 = arith.constant 0 : index
    %50 = vector.load %arg4[%c12, %c0_24] : memref<36x512xf32, #tpu.memory_space<vmem>>, vector<4x256xf32>
    tpu.vector_store %arg4[%c12, %c0_24], %49 {strides = array<i32>} : memref<36x512xf32, #tpu.memory_space<vmem>>, vector<4x256xf32>,
    %c0_25 = arith.constant 0 : index
    %c0_26 = arith.constant 0 : index
    %c0_27 = arith.constant 0 : index
    %c17 = arith.constant 17 : index
    %51 = vector.load %arg1[%c0_25, %c0_26, %c0_27, %c17] : memref<1x2x4x290xf32, #tpu.memory_space<vmem>>, vector<1x1x4x256xf32>
    %52 = vector.shape_cast %51 : vector<1x1x4x256xf32> to vector<4x256xf32>
    %c16_28 = arith.constant 16 : index
    %c0_29 = arith.constant 0 : index
    %53 = vector.load %arg4[%c16_28, %c0_29] : memref<36x512xf32, #tpu.memory_space<vmem>>, vector<4x256xf32>
    tpu.vector_store %arg4[%c16_28, %c0_29], %52 {strides = array<i32>} : memref<36x512xf32, #tpu.memory_space<vmem>>, vector<4x256xf32>,
    %c0_30 = arith.constant 0 : index
    %c0_31 = arith.constant 0 : index
    %c0_32 = arith.constant 0 : index
    %c18 = arith.constant 18 : index
    %54 = vector.load %arg1[%c0_30, %c0_31, %c0_32, %c18] : memref<1x2x4x290xf32, #tpu.memory_space<vmem>>, vector<1x1x4x256xf32>
    %55 = vector.shape_cast %54 : vector<1x1x4x256xf32> to vector<4x256xf32>
    %cst_33 = arith.constant 0.000000e+00 : f32
    %56 = vector.shape_cast %26 : vector<1x256xi1> to vector<1x256xi1>
    %57 = vector.broadcast %56 : vector<1x256xi1> to vector<4x256xi1>
    %58 = vector.broadcast %cst_33 : f32 to vector<4x256xf32>
    %59 = arith.select %57, %55, %58 : vector<4x256xi1>, vector<4x256xf32>
    %c20 = arith.constant 20 : index
    %c0_34 = arith.constant 0 : index
    %60 = vector.load %arg4[%c20, %c0_34] : memref<36x512xf32, #tpu.memory_space<vmem>>, vector<4x256xf32>
    tpu.vector_store %arg4[%c20, %c0_34], %59 {strides = array<i32>} : memref<36x512xf32, #tpu.memory_space<vmem>>, vector<4x256xf32>,
    %c0_35 = arith.constant 0 : index
    %c0_36 = arith.constant 0 : index
    %c0_37 = arith.constant 0 : index
    %c32 = arith.constant 32 : index
    %61 = vector.load %arg1[%c0_35, %c0_36, %c0_37, %c32] : memref<1x2x4x290xf32, #tpu.memory_space<vmem>>, vector<1x1x4x256xf32>
    %62 = vector.shape_cast %61 : vector<1x1x4x256xf32> to vector<4x256xf32>
    %cst_38 = arith.constant 0.000000e+00 : f32
    %63 = vector.shape_cast %21 : vector<1x256xi1> to vector<1x256xi1>
    %64 = vector.broadcast %63 : vector<1x256xi1> to vector<4x256xi1>
    %65 = vector.broadcast %cst_38 : f32 to vector<4x256xf32>
    %66 = arith.select %64, %62, %65 : vector<4x256xi1>, vector<4x256xf32>
    %c24 = arith.constant 24 : index
    %c0_39 = arith.constant 0 : index
    %67 = vector.load %arg4[%c24, %c0_39] : memref<36x512xf32, #tpu.memory_space<vmem>>, vector<4x256xf32>
    tpu.vector_store %arg4[%c24, %c0_39], %66 {strides = array<i32>} : memref<36x512xf32, #tpu.memory_space<vmem>>, vector<4x256xf32>,
    %c0_40 = arith.constant 0 : index
    %c0_41 = arith.constant 0 : index
    %c0_42 = arith.constant 0 : index
    %c33 = arith.constant 33 : index
    %68 = vector.load %arg1[%c0_40, %c0_41, %c0_42, %c33] : memref<1x2x4x290xf32, #tpu.memory_space<vmem>>, vector<1x1x4x256xf32>
    %69 = vector.shape_cast %68 : vector<1x1x4x256xf32> to vector<4x256xf32>
    %c28 = arith.constant 28 : index
    %c0_43 = arith.constant 0 : index
    %70 = vector.load %arg4[%c28, %c0_43] : memref<36x512xf32, #tpu.memory_space<vmem>>, vector<4x256xf32>
    tpu.vector_store %arg4[%c28, %c0_43], %69 {strides = array<i32>} : memref<36x512xf32, #tpu.memory_space<vmem>>, vector<4x256xf32>,
    %c0_44 = arith.constant 0 : index
    %c0_45 = arith.constant 0 : index
    %c0_46 = arith.constant 0 : index
    %c34 = arith.constant 34 : index
    %71 = vector.load %arg1[%c0_44, %c0_45, %c0_46, %c34] : memref<1x2x4x290xf32, #tpu.memory_space<vmem>>, vector<1x1x4x256xf32>
    %72 = vector.shape_cast %71 : vector<1x1x4x256xf32> to vector<4x256xf32>
    %cst_47 = arith.constant 0.000000e+00 : f32
    %73 = vector.shape_cast %26 : vector<1x256xi1> to vector<1x256xi1>
    %74 = vector.broadcast %73 : vector<1x256xi1> to vector<4x256xi1>
    %75 = vector.broadcast %cst_47 : f32 to vector<4x256xf32>
    %76 = arith.select %74, %72, %75 : vector<4x256xi1>, vector<4x256xf32>
    %c32_48 = arith.constant 32 : index
    %c0_49 = arith.constant 0 : index
    %77 = vector.load %arg4[%c32_48, %c0_49] : memref<36x512xf32, #tpu.memory_space<vmem>>, vector<4x256xf32>
    tpu.vector_store %arg4[%c32_48, %c0_49], %76 {strides = array<i32>} : memref<36x512xf32, #tpu.memory_space<vmem>>, vector<4x256xf32>,
    %c0_50 = arith.constant 0 : index
    %c1_51 = arith.constant 1 : index
    %c0_52 = arith.constant 0 : index
    %c0_53 = arith.constant 0 : index
    %78 = vector.load %arg1[%c0_50, %c1_51, %c0_52, %c0_53] : memref<1x2x4x290xf32, #tpu.memory_space<vmem>>, vector<1x1x4x256xf32>
    %79 = vector.shape_cast %78 : vector<1x1x4x256xf32> to vector<4x256xf32>
    %cst_54 = arith.constant 0.000000e+00 : f32
    %80 = vector.shape_cast %21 : vector<1x256xi1> to vector<1x256xi1>
    %81 = vector.broadcast %80 : vector<1x256xi1> to vector<4x256xi1>
    %82 = vector.broadcast %cst_54 : f32 to vector<4x256xf32>
    %83 = arith.select %81, %79, %82 : vector<4x256xi1>, vector<4x256xf32>
    %c0_55 = arith.constant 0 : index
    %c256 = arith.constant 256 : index
    %84 = vector.load %arg4[%c0_55, %c256] : memref<36x512xf32, #tpu.memory_space<vmem>>, vector<4x256xf32>
    tpu.vector_store %arg4[%c0_55, %c256], %83 {strides = array<i32>} : memref<36x512xf32, #tpu.memory_space<vmem>>, vector<4x256xf32>,
    %c0_56 = arith.constant 0 : index
    %c1_57 = arith.constant 1 : index
    %c0_58 = arith.constant 0 : index
    %c1_59 = arith.constant 1 : index
    %85 = vector.load %arg1[%c0_56, %c1_57, %c0_58, %c1_59] : memref<1x2x4x290xf32, #tpu.memory_space<vmem>>, vector<1x1x4x256xf32>
    %86 = vector.shape_cast %85 : vector<1x1x4x256xf32> to vector<4x256xf32>
    %c4_60 = arith.constant 4 : index
    %c256_61 = arith.constant 256 : index
    %87 = vector.load %arg4[%c4_60, %c256_61] : memref<36x512xf32, #tpu.memory_space<vmem>>, vector<4x256xf32>
    tpu.vector_store %arg4[%c4_60, %c256_61], %86 {strides = array<i32>} : memref<36x512xf32, #tpu.memory_space<vmem>>, vector<4x256xf32>,
    %c0_62 = arith.constant 0 : index
    %c1_63 = arith.constant 1 : index
    %c0_64 = arith.constant 0 : index
    %c2_65 = arith.constant 2 : index
    %88 = vector.load %arg1[%c0_62, %c1_63, %c0_64, %c2_65] : memref<1x2x4x290xf32, #tpu.memory_space<vmem>>, vector<1x1x4x256xf32>
    %89 = vector.shape_cast %88 : vector<1x1x4x256xf32> to vector<4x256xf32>
    %cst_66 = arith.constant 0.000000e+00 : f32
    %90 = vector.shape_cast %26 : vector<1x256xi1> to vector<1x256xi1>
    %91 = vector.broadcast %90 : vector<1x256xi1> to vector<4x256xi1>
    %92 = vector.broadcast %cst_66 : f32 to vector<4x256xf32>
    %93 = arith.select %91, %89, %92 : vector<4x256xi1>, vector<4x256xf32>
    %c8_67 = arith.constant 8 : index
    %c256_68 = arith.constant 256 : index
    %94 = vector.load %arg4[%c8_67, %c256_68] : memref<36x512xf32, #tpu.memory_space<vmem>>, vector<4x256xf32>
    tpu.vector_store %arg4[%c8_67, %c256_68], %93 {strides = array<i32>} : memref<36x512xf32, #tpu.memory_space<vmem>>, vector<4x256xf32>,
    %c0_69 = arith.constant 0 : index
    %c1_70 = arith.constant 1 : index
    %c0_71 = arith.constant 0 : index
    %c16_72 = arith.constant 16 : index
    %95 = vector.load %arg1[%c0_69, %c1_70, %c0_71, %c16_72] : memref<1x2x4x290xf32, #tpu.memory_space<vmem>>, vector<1x1x4x256xf32>
    %96 = vector.shape_cast %95 : vector<1x1x4x256xf32> to vector<4x256xf32>
    %cst_73 = arith.constant 0.000000e+00 : f32
    %97 = vector.shape_cast %21 : vector<1x256xi1> to vector<1x256xi1>
    %98 = vector.broadcast %97 : vector<1x256xi1> to vector<4x256xi1>
    %99 = vector.broadcast %cst_73 : f32 to vector<4x256xf32>
    %100 = arith.select %98, %96, %99 : vector<4x256xi1>, vector<4x256xf32>
    %c12_74 = arith.constant 12 : index
    %c256_75 = arith.constant 256 : index
    %101 = vector.load %arg4[%c12_74, %c256_75] : memref<36x512xf32, #tpu.memory_space<vmem>>, vector<4x256xf32>
    tpu.vector_store %arg4[%c12_74, %c256_75], %100 {strides = array<i32>} : memref<36x512xf32, #tpu.memory_space<vmem>>, vector<4x256xf32>,
    %c0_76 = arith.constant 0 : index
    %c1_77 = arith.constant 1 : index
    %c0_78 = arith.constant 0 : index
    %c17_79 = arith.constant 17 : index
    %102 = vector.load %arg1[%c0_76, %c1_77, %c0_78, %c17_79] : memref<1x2x4x290xf32, #tpu.memory_space<vmem>>, vector<1x1x4x256xf32>
    %103 = vector.shape_cast %102 : vector<1x1x4x256xf32> to vector<4x256xf32>
    %c16_80 = arith.constant 16 : index
    %c256_81 = arith.constant 256 : index
    %104 = vector.load %arg4[%c16_80, %c256_81] : memref<36x512xf32, #tpu.memory_space<vmem>>, vector<4x256xf32>
    tpu.vector_store %arg4[%c16_80, %c256_81], %103 {strides = array<i32>} : memref<36x512xf32, #tpu.memory_space<vmem>>, vector<4x256xf32>,
    %c0_82 = arith.constant 0 : index
    %c1_83 = arith.constant 1 : index
    %c0_84 = arith.constant 0 : index
    %c18_85 = arith.constant 18 : index
    %105 = vector.load %arg1[%c0_82, %c1_83, %c0_84, %c18_85] : memref<1x2x4x290xf32, #tpu.memory_space<vmem>>, vector<1x1x4x256xf32>
    %106 = vector.shape_cast %105 : vector<1x1x4x256xf32> to vector<4x256xf32>
    %cst_86 = arith.constant 0.000000e+00 : f32
    %107 = vector.shape_cast %26 : vector<1x256xi1> to vector<1x256xi1>
    %108 = vector.broadcast %107 : vector<1x256xi1> to vector<4x256xi1>
    %109 = vector.broadcast %cst_86 : f32 to vector<4x256xf32>
    %110 = arith.select %108, %106, %109 : vector<4x256xi1>, vector<4x256xf32>
    %c20_87 = arith.constant 20 : index
    %c256_88 = arith.constant 256 : index
    %111 = vector.load %arg4[%c20_87, %c256_88] : memref<36x512xf32, #tpu.memory_space<vmem>>, vector<4x256xf32>
    tpu.vector_store %arg4[%c20_87, %c256_88], %110 {strides = array<i32>} : memref<36x512xf32, #tpu.memory_space<vmem>>, vector<4x256xf32>,
    %c0_89 = arith.constant 0 : index
    %c1_90 = arith.constant 1 : index
    %c0_91 = arith.constant 0 : index
    %c32_92 = arith.constant 32 : index
    %112 = vector.load %arg1[%c0_89, %c1_90, %c0_91, %c32_92] : memref<1x2x4x290xf32, #tpu.memory_space<vmem>>, vector<1x1x4x256xf32>
    %113 = vector.shape_cast %112 : vector<1x1x4x256xf32> to vector<4x256xf32>
    %cst_93 = arith.constant 0.000000e+00 : f32
    %114 = vector.shape_cast %21 : vector<1x256xi1> to vector<1x256xi1>
    %115 = vector.broadcast %114 : vector<1x256xi1> to vector<4x256xi1>
    %116 = vector.broadcast %cst_93 : f32 to vector<4x256xf32>
    %117 = arith.select %115, %113, %116 : vector<4x256xi1>, vector<4x256xf32>
    %c24_94 = arith.constant 24 : index
    %c256_95 = arith.constant 256 : index
    %118 = vector.load %arg4[%c24_94, %c256_95] : memref<36x512xf32, #tpu.memory_space<vmem>>, vector<4x256xf32>
    tpu.vector_store %arg4[%c24_94, %c256_95], %117 {strides = array<i32>} : memref<36x512xf32, #tpu.memory_space<vmem>>, vector<4x256xf32>,
    %c0_96 = arith.constant 0 : index
    %c1_97 = arith.constant 1 : index
    %c0_98 = arith.constant 0 : index
    %c33_99 = arith.constant 33 : index
    %119 = vector.load %arg1[%c0_96, %c1_97, %c0_98, %c33_99] : memref<1x2x4x290xf32, #tpu.memory_space<vmem>>, vector<1x1x4x256xf32>
    %120 = vector.shape_cast %119 : vector<1x1x4x256xf32> to vector<4x256xf32>
    %c28_100 = arith.constant 28 : index
    %c256_101 = arith.constant 256 : index
    %121 = vector.load %arg4[%c28_100, %c256_101] : memref<36x512xf32, #tpu.memory_space<vmem>>, vector<4x256xf32>
    tpu.vector_store %arg4[%c28_100, %c256_101], %120 {strides = array<i32>} : memref<36x512xf32, #tpu.memory_space<vmem>>, vector<4x256xf32>,
    %c0_102 = arith.constant 0 : index
    %c1_103 = arith.constant 1 : index
    %c0_104 = arith.constant 0 : index
    %c34_105 = arith.constant 34 : index
    %122 = vector.load %arg1[%c0_102, %c1_103, %c0_104, %c34_105] : memref<1x2x4x290xf32, #tpu.memory_space<vmem>>, vector<1x1x4x256xf32>
    %123 = vector.shape_cast %122 : vector<1x1x4x256xf32> to vector<4x256xf32>
    %cst_106 = arith.constant 0.000000e+00 : f32
    %124 = vector.shape_cast %26 : vector<1x256xi1> to vector<1x256xi1>
    %125 = vector.broadcast %124 : vector<1x256xi1> to vector<4x256xi1>
    %126 = vector.broadcast %cst_106 : f32 to vector<4x256xf32>
    %127 = arith.select %125, %123, %126 : vector<4x256xi1>, vector<4x256xf32>
    %c32_107 = arith.constant 32 : index
    %c256_108 = arith.constant 256 : index
    %128 = vector.load %arg4[%c32_107, %c256_108] : memref<36x512xf32, #tpu.memory_space<vmem>>, vector<4x256xf32>
    tpu.vector_store %arg4[%c32_107, %c256_108], %127 {strides = array<i32>} : memref<36x512xf32, #tpu.memory_space<vmem>>, vector<4x256xf32>,
    %c0_109 = arith.constant 0 : index
    %c0_110 = arith.constant 0 : index
    %c0_111 = arith.constant 0 : index
    %129 = vector.load %arg2[%c0_109, %c0_110, %c0_111] : memref<1x8x36xbf16, #tpu.memory_space<vmem>>, vector<1x8x36xbf16>
    %130 = vector.shape_cast %129 : vector<1x8x36xbf16> to vector<8x36xbf16>
    %c0_112 = arith.constant 0 : index
    %c0_113 = arith.constant 0 : index
    %131 = vector.load %arg4[%c0_112, %c0_113] : memref<36x512xf32, #tpu.memory_space<vmem>>, vector<36x512xf32>
    %132 = arith.truncf %131 : vector<36x512xf32> to vector<36x512xbf16>
    %cst_114 = arith.constant dense<0.000000e+00> : vector<8x512xf32>
    %133 = tpu.matmul %130, %132, %cst_114 {dimension_numbers = #tpu.dot_dimension_numbers<[1], [0], [0], [1], [0, 0, 1, 1], [], []>} : vector<8x36xbf16>, vector<36x512xbf16>, vector<8x512xf32> -> vector<8x512xf32>
    %134 = vector.extract_strided_slice %133 {offsets = [0, 0], sizes = [8, 256], strides = [1, 1]} : vector<8x512xf32> to vector<8x256xf32>
    %cst_115 = arith.constant dense<0.000000e+00> : vector<8xf32>
    %135 = vector.multi_reduction <add>, %134, %cst_115 [1] : vector<8x256xf32> to vector<8xf32>
    %136 = vector.shape_cast %135 : vector<8xf32> to vector<8x1xf32>
    %cst_116 = arith.constant 3.906250e-03 : f32
    %137 = vector.broadcast %cst_116 : f32 to vector<8x1xf32>
    %138 = arith.mulf %136, %137 : vector<8x1xf32>
    %139 = vector.broadcast %138 : vector<8x1xf32> to vector<8x256xf32>
    %140 = arith.subf %134, %139 : vector<8x256xf32>
    %141 = arith.mulf %140, %140 : vector<8x256xf32>
    %cst_117 = arith.constant dense<0.000000e+00> : vector<8xf32>
    %142 = vector.multi_reduction <add>, %141, %cst_117 [1] : vector<8x256xf32> to vector<8xf32>
    %143 = vector.shape_cast %142 : vector<8xf32> to vector<8x1xf32>
    %cst_118 = arith.constant 3.906250e-03 : f32
    %144 = vector.broadcast %cst_118 : f32 to vector<8x1xf32>
    %145 = arith.mulf %143, %144 : vector<8x1xf32>
    %cst_119 = arith.constant 9.99999974E-6 : f32
    %146 = vector.broadcast %cst_119 : f32 to vector<8x1xf32>
    %147 = arith.addf %145, %146 : vector<8x1xf32>
    %148 = math.rsqrt %147 : vector<8x1xf32>
    %149 = vector.broadcast %148 : vector<8x1xf32> to vector<8x256xf32>
    %150 = arith.mulf %140, %149 : vector<8x256xf32>
    %c0_120 = arith.constant 0 : index
    %c0_121 = arith.constant 0 : index
    %c0_122 = arith.constant 0 : index
    %c0_123 = arith.constant 0 : index
    %151 = vector.load %arg3[%c0_120, %c0_121, %c0_122, %c0_123] : memref<1x2x8x256xf32, #tpu.memory_space<vmem>>, vector<1x1x8x256xf32>
    %152 = vector.shape_cast %151 : vector<1x1x8x256xf32> to vector<8x256xf32>
    %153 = vector.shape_cast %150 : vector<8x256xf32> to vector<1x1x8x256xf32>
    tpu.vector_store %arg3[%c0_120, %c0_121, %c0_122, %c0_123], %153 {strides = array<i32>} : memref<1x2x8x256xf32, #tpu.memory_space<vmem>>, vector<1x1x8x256xf32>,
    %154 = vector.extract_strided_slice %133 {offsets = [0, 256], sizes = [8, 256], strides = [1, 1]} : vector<8x512xf32> to vector<8x256xf32>
    %cst_124 = arith.constant dense<0.000000e+00> : vector<8xf32>
    %155 = vector.multi_reduction <add>, %154, %cst_124 [1] : vector<8x256xf32> to vector<8xf32>
    %156 = vector.shape_cast %155 : vector<8xf32> to vector<8x1xf32>
    %cst_125 = arith.constant 3.906250e-03 : f32
    %157 = vector.broadcast %cst_125 : f32 to vector<8x1xf32>
    %158 = arith.mulf %156, %157 : vector<8x1xf32>
    %159 = vector.broadcast %158 : vector<8x1xf32> to vector<8x256xf32>
    %160 = arith.subf %154, %159 : vector<8x256xf32>
    %161 = arith.mulf %160, %160 : vector<8x256xf32>
    %cst_126 = arith.constant dense<0.000000e+00> : vector<8xf32>
    %162 = vector.multi_reduction <add>, %161, %cst_126 [1] : vector<8x256xf32> to vector<8xf32>
    %163 = vector.shape_cast %162 : vector<8xf32> to vector<8x1xf32>
    %cst_127 = arith.constant 3.906250e-03 : f32
    %164 = vector.broadcast %cst_127 : f32 to vector<8x1xf32>
    %165 = arith.mulf %163, %164 : vector<8x1xf32>
    %cst_128 = arith.constant 9.99999974E-6 : f32
    %166 = vector.broadcast %cst_128 : f32 to vector<8x1xf32>
    %167 = arith.addf %165, %166 : vector<8x1xf32>
    %168 = math.rsqrt %167 : vector<8x1xf32>
    %169 = vector.broadcast %168 : vector<8x1xf32> to vector<8x256xf32>
    %170 = arith.mulf %160, %169 : vector<8x256xf32>
    %c0_129 = arith.constant 0 : index
    %c1_130 = arith.constant 1 : index
    %c0_131 = arith.constant 0 : index
    %c0_132 = arith.constant 0 : index
    %171 = vector.load %arg3[%c0_129, %c1_130, %c0_131, %c0_132] : memref<1x2x8x256xf32, #tpu.memory_space<vmem>>, vector<1x1x8x256xf32>
    %172 = vector.shape_cast %171 : vector<1x1x8x256xf32> to vector<8x256xf32>
    %173 = vector.shape_cast %170 : vector<8x256xf32> to vector<1x1x8x256xf32>
    tpu.vector_store %arg3[%c0_129, %c1_130, %c0_131, %c0_132], %173 {strides = array<i32>} : memref<1x2x8x256xf32, #tpu.memory_space<vmem>>, vector<1x1x8x256xf32>,
    return
  }
  func.func @transform_0(%arg0: i32) -> (i32, i32, i32, i32) {
    %c0_i32 = arith.constant 0 : i32
    %c0_i32_0 = arith.constant 0 : i32
    %c0_i32_1 = arith.constant 0 : i32
    %c0_i32_2 = arith.constant 0 : i32
    return %arg0, %c0_i32, %c0_i32_0, %c0_i32_1 : i32, i32, i32, i32
  }
  func.func @transform_1(%arg0: i32) -> (i32, i32, i32) {
    %c0_i32 = arith.constant 0 : i32
    %c0_i32_0 = arith.constant 0 : i32
    %c0_i32_1 = arith.constant 0 : i32
    return %arg0, %c0_i32, %c0_i32_0 : i32, i32, i32
  }
  func.func @transform_2(%arg0: i32) -> (i32, i32, i32, i32) {
    %c0_i32 = arith.constant 0 : i32
    %c0_i32_0 = arith.constant 0 : i32
    %c0_i32_1 = arith.constant 0 : i32
    %c0_i32_2 = arith.constant 0 : i32
    return %arg0, %c0_i32, %c0_i32_0, %c0_i32_1 : i32, i32, i32, i32
  }
}

</mosaic_0001>

<llo_original>
// kernel: custom-call
$region0: #{custom-call}
  %s0 = inlined_call_operand.hbm [shape: c64[2,4,16,16], index: 0, kind: input, shape index: {}]
  %s1 = inlined_call_operand.vmem [shape: f32[2,4,16,16], index: 1, kind: output, shape index: {}]
  $region1: #{custom-call} parent=0
    #allocation0 [shape = 's32[1]{0}', space=sflag, size = 0x4, scoped, tag = 'scoped memory for custom-call']
    %2 = vsyncpa [#allocation0], 0
    %s3 = sshll.u32 %s1, 4
    %s4 = int_to_ptr.vmem [resolvable:$true] %s3
    %6 = dma.hbm_to_vmem [thread:$0]  %s0, 2048, %s4, [#allocation0]
    %7 = dma.done [#allocation0], 2048
    %8 = vsyncpa [#allocation0], 1

// kernel: custom-call.1
$region0: #{custom-call.1}
  %s0 = inlined_call_operand.hbm [shape: c64[2,4,16,16], index: 0, kind: input, shape index: {}]
  %s1 = inlined_call_operand.vmem [shape: f32[2,4,16,16], index: 1, kind: output, shape index: {}]
  %s2 = scalar_lea.hbm %s0, 2048
  $region1: #{custom-call.1} parent=0
    #allocation0 [shape = 's32[1]{0}', space=sflag, size = 0x4, scoped, tag = 'scoped memory for custom-call.1']
    %3 = vsyncpa [#allocation0], 0
    %s4 = sshll.u32 %s1, 4
    %s5 = int_to_ptr.vmem [resolvable:$true] %s4
    %7 = dma.hbm_to_vmem [thread:$0]  %s2, 2048, %s5, [#allocation0]
    %8 = dma.done [#allocation0], 2048
    %9 = vsyncpa [#allocation0], 1

// kernel: squeeze.2
$region0: #{squeeze.2}
  %s0 = inlined_call_operand.vmem [shape: f32[1,2,8,256], index: 0, kind: input, shape index: {}]
  %s1 = inlined_call_operand.vmem [shape: f32[2,8,16,16], index: 1, kind: output, shape index: {}]
  %v2 = vld [vmem:[%s0] sm:$0xff]
  %vm3 = vcmask 130048
  %4 = vst.msk [vmem:[%s1] ss:$16 sm:$0x3] %vm3, %v2
  %5 = vst.msk [vmem:[%s1] ss:$16 sm:$0xc] %vm3, %v2
  %6 = vst.msk [vmem:[%s1] ss:$16 sm:$0x30] %vm3, %v2
  %7 = vst.msk [vmem:[%s1] ss:$16 sm:$0xc0] %vm3, %v2
  %s8 = scalar_lea.vmem %s0, 8
  %v9 = vld [vmem:[%s8] sm:$0xff]
  %vm10 = vcmask 130048
  %s11 = scalar_lea.vmem %s1, 8
  %12 = vst.msk [vmem:[%s11] ss:$16 sm:$0x3] %vm10, %v9
  %s13 = scalar_lea.vmem %s1, 8
  %14 = vst.msk [vmem:[%s13] ss:$16 sm:$0xc] %vm10, %v9
  %s15 = scalar_lea.vmem %s1, 8
  %16 = vst.msk [vmem:[%s15] ss:$16 sm:$0x30] %vm10, %v9
  %s17 = scalar_lea.vmem %s1, 8
  %18 = vst.msk [vmem:[%s17] ss:$16 sm:$0xc0] %vm10, %v9
  %s19 = scalar_lea.vmem %s0, 16
  %v20 = vld [vmem:[%s19] sm:$0xff]
  %vm21 = vcmask 130048
  %s22 = scalar_lea.vmem %s1, 128
  %23 = vst.msk [vmem:[%s22] ss:$16 sm:$0x3] %vm21, %v20
  %s24 = scalar_lea.vmem %s1, 128
  %25 = vst.msk [vmem:[%s24] ss:$16 sm:$0xc] %vm21, %v20
  %s26 = scalar_lea.vmem %s1, 128
  %27 = vst.msk [vmem:[%s26] ss:$16 sm:$0x30] %vm21, %v20
  %s28 = scalar_lea.vmem %s1, 128
  %29 = vst.msk [vmem:[%s28] ss:$16 sm:$0xc0] %vm21, %v20
  %s30 = scalar_lea.vmem %s0, 24
  %v31 = vld [vmem:[%s30] sm:$0xff]
  %vm32 = vcmask 130048
  %s33 = scalar_lea.vmem %s1, 136
  %34 = vst.msk [vmem:[%s33] ss:$16 sm:$0x3] %vm32, %v31
  %s35 = scalar_lea.vmem %s1, 136
  %36 = vst.msk [vmem:[%s35] ss:$16 sm:$0xc] %vm32, %v31
  %s37 = scalar_lea.vmem %s1, 136
  %38 = vst.msk [vmem:[%s37] ss:$16 sm:$0x30] %vm32, %v31
  %s39 = scalar_lea.vmem %s1, 136
  %40 = vst.msk [vmem:[%s39] ss:$16 sm:$0xc0] %vm32, %v31
  %v41 = vld.sshfl [vmem:[%s0] sm:$0xff pattern:$0xb3a29180]
  %42 = vrot.lane.b32.xlu0 %v41, 112
  %v43 = vpop.permute.xlu0 %42
  %vm44 = vcmask 130048
  %s45 = scalar_lea.vmem %s1, 1
  %46 = vst.msk [vmem:[%s45] ss:$8 sm:$0xf] %vm44, %v43
  %s47 = scalar_lea.vmem %s1, 1
  %48 = vst.msk [vmem:[%s47] ss:$8 sm:$0xf0] %vm44, %v43
  %s49 = scalar_lea.vmem %s0, 4
  %v50 = vld.sshfl [vmem:[%s49] sm:$0xff pattern:$0xb3a29180]
  %51 = vrot.lane.b32.xlu0 %v50, 112
  %v52 = vpop.permute.xlu0 %51
  %vm53 = vcmask 130048
  %s54 = scalar_lea.vmem %s1, 65
  %55 = vst.msk [vmem:[%s54] ss:$8 sm:$0xf] %vm53, %v52
  %s56 = scalar_lea.vmem %s1, 65
  %57 = vst.msk [vmem:[%s56] ss:$8 sm:$0xf0] %vm53, %v52
  %s58 = scalar_lea.vmem %s0, 16
  %v59 = vld.sshfl [vmem:[%s58] sm:$0xff pattern:$0xb3a29180]
  %60 = vrot.lane.b32.xlu0 %v59, 112
  %v61 = vpop.permute.xlu0 %60
  %vm62 = vcmask 130048
  %s63 = scalar_lea.vmem %s1, 129
  %64 = vst.msk [vmem:[%s63] ss:$8 sm:$0xf] %vm62, %v61
  %s65 = scalar_lea.vmem %s1, 129
  %66 = vst.msk [vmem:[%s65] ss:$8 sm:$0xf0] %vm62, %v61
  %s67 = scalar_lea.vmem %s0, 20
  %v68 = vld.sshfl [vmem:[%s67] sm:$0xff pattern:$0xb3a29180]
  %69 = vrot.lane.b32.xlu0 %v68, 112
  %v70 = vpop.permute.xlu0 %69
  %vm71 = vcmask 130048
  %s72 = scalar_lea.vmem %s1, 193
  %73 = vst.msk [vmem:[%s72] ss:$8 sm:$0xf] %vm71, %v70
  %s74 = scalar_lea.vmem %s1, 193
  %75 = vst.msk [vmem:[%s74] ss:$8 sm:$0xf0] %vm71, %v70
  %v76 = vld.sshfl [vmem:[%s0] sm:$0xff pattern:$0xb3a29180]
  %77 = vrot.lane.b32.xlu0 %v76, 96
  %v78 = vpop.permute.xlu0 %77
  %vm79 = vcmask 130048
  %s80 = scalar_lea.vmem %s1, 2
  %81 = vst.msk [vmem:[%s80] ss:$8 sm:$0xf] %vm79, %v78
  %s82 = scalar_lea.vmem %s1, 2
  %83 = vst.msk [vmem:[%s82] ss:$8 sm:$0xf0] %vm79, %v78
  %s84 = scalar_lea.vmem %s0, 4
  %v85 = vld.sshfl [vmem:[%s84] sm:$0xff pattern:$0xb3a29180]
  %86 = vrot.lane.b32.xlu0 %v85, 96
  %v87 = vpop.permute.xlu0 %86
  %vm88 = vcmask 130048
  %s89 = scalar_lea.vmem %s1, 66
  %90 = vst.msk [vmem:[%s89] ss:$8 sm:$0xf] %vm88, %v87
  %s91 = scalar_lea.vmem %s1, 66
  %92 = vst.msk [vmem:[%s91] ss:$8 sm:$0xf0] %vm88, %v87
  %s93 = scalar_lea.vmem %s0, 16
  %v94 = vld.sshfl [vmem:[%s93] sm:$0xff pattern:$0xb3a29180]
  %95 = vrot.lane.b32.xlu0 %v94, 96
  %v96 = vpop.permute.xlu0 %95
  %vm97 = vcmask 130048
  %s98 = scalar_lea.vmem %s1, 130
  %99 = vst.msk [vmem:[%s98] ss:$8 sm:$0xf] %vm97, %v96
  %s100 = scalar_lea.vmem %s1, 130
  %101 = vst.msk [vmem:[%s100] ss:$8 sm:$0xf0] %vm97, %v96
  %s102 = scalar_lea.vmem %s0, 20
  %v103 = vld.sshfl [vmem:[%s102] sm:$0xff pattern:$0xb3a29180]
  %104 = vrot.lane.b32.xlu0 %v103, 96
  %v105 = vpop.permute.xlu0 %104
  %vm106 = vcmask 130048
  %s107 = scalar_lea.vmem %s1, 194
  %108 = vst.msk [vmem:[%s107] ss:$8 sm:$0xf] %vm106, %v105
  %s109 = scalar_lea.vmem %s1, 194
  %110 = vst.msk [vmem:[%s109] ss:$8 sm:$0xf0] %vm106, %v105
  %v111 = vld.sshfl [vmem:[%s0] sm:$0xff pattern:$0xb3a29180]
  %112 = vrot.lane.b32.xlu0 %v111, 80
  %v113 = vpop.permute.xlu0 %112
  %vm114 = vcmask 130048
  %s115 = scalar_lea.vmem %s1, 3
  %116 = vst.msk [vmem:[%s115] ss:$8 sm:$0xf] %vm114, %v113
  %s117 = scalar_lea.vmem %s1, 3
  %118 = vst.msk [vmem:[%s117] ss:$8 sm:$0xf0] %vm114, %v113
  %s119 = scalar_lea.vmem %s0, 4
  %v120 = vld.sshfl [vmem:[%s119] sm:$0xff pattern:$0xb3a29180]
  %121 = vrot.lane.b32.xlu0 %v120, 80
  %v122 = vpop.permute.xlu0 %121
  %vm123 = vcmask 130048
  %s124 = scalar_lea.vmem %s1, 67
  %125 = vst.msk [vmem:[%s124] ss:$8 sm:$0xf] %vm123, %v122
  %s126 = scalar_lea.vmem %s1, 67
  %127 = vst.msk [vmem:[%s126] ss:$8 sm:$0xf0] %vm123, %v122
  %s128 = scalar_lea.vmem %s0, 16
  %v129 = vld.sshfl [vmem:[%s128] sm:$0xff pattern:$0xb3a29180]
  %130 = vrot.lane.b32.xlu0 %v129, 80
  %v131 = vpop.permute.xlu0 %130
  %vm132 = vcmask 130048
  %s133 = scalar_lea.vmem %s1, 131
  %134 = vst.msk [vmem:[%s133] ss:$8 sm:$0xf] %vm132, %v131
  %s135 = scalar_lea.vmem %s1, 131
  %136 = vst.msk [vmem:[%s135] ss:$8 sm:$0xf0] %vm132, %v131
  %s137 = scalar_lea.vmem %s0, 20
  %v138 = vld.sshfl [vmem:[%s137] sm:$0xff pattern:$0xb3a29180]
  %139 = vrot.lane.b32.xlu0 %v138, 80
  %v140 = vpop.permute.xlu0 %139
  %vm141 = vcmask 130048
  %s142 = scalar_lea.vmem %s1, 195
  %143 = vst.msk [vmem:[%s142] ss:$8 sm:$0xf] %vm141, %v140
  %s144 = scalar_lea.vmem %s1, 195
  %145 = vst.msk [vmem:[%s144] ss:$8 sm:$0xf0] %vm141, %v140
  %v146 = vld.sshfl [vmem:[%s0] sm:$0xff pattern:$0xb3a29180]
  %147 = vrot.lane.b32.xlu0 %v146, 64
  %v148 = vpop.permute.xlu0 %147
  %vm149 = vcmask 130048
  %s150 = scalar_lea.vmem %s1, 4
  %151 = vst.msk [vmem:[%s150] ss:$8 sm:$0xf] %vm149, %v148
  %s152 = scalar_lea.vmem %s1, 4
  %153 = vst.msk [vmem:[%s152] ss:$8 sm:$0xf0] %vm149, %v148
  %s154 = scalar_lea.vmem %s0, 4
  %v155 = vld.sshfl [vmem:[%s154] sm:$0xff pattern:$0xb3a29180]
  %156 = vrot.lane.b32.xlu0 %v155, 64
  %v157 = vpop.permute.xlu0 %156
  %vm158 = vcmask 130048
  %s159 = scalar_lea.vmem %s1, 68
  %160 = vst.msk [vmem:[%s159] ss:$8 sm:$0xf] %vm158, %v157
  %s161 = scalar_lea.vmem %s1, 68
  %162 = vst.msk [vmem:[%s161] ss:$8 sm:$0xf0] %vm158, %v157
  %s163 = scalar_lea.vmem %s0, 16
  %v164 = vld.sshfl [vmem:[%s163] sm:$0xff pattern:$0xb3a29180]
  %165 = vrot.lane.b32.xlu0 %v164, 64
  %v166 = vpop.permute.xlu0 %165
  %vm167 = vcmask 130048
  %s168 = scalar_lea.vmem %s1, 132
  %169 = vst.msk [vmem:[%s168] ss:$8 sm:$0xf] %vm167, %v166
  %s170 = scalar_lea.vmem %s1, 132
  %171 = vst.msk [vmem:[%s170] ss:$8 sm:$0xf0] %vm167, %v166
  %s172 = scalar_lea.vmem %s0, 20
  %v173 = vld.sshfl [vmem:[%s172] sm:$0xff pattern:$0xb3a29180]
  %174 = vrot.lane.b32.xlu0 %v173, 64
  %v175 = vpop.permute.xlu0 %174
  %vm176 = vcmask 130048
  %s177 = scalar_lea.vmem %s1, 196
  %178 = vst.msk [vmem:[%s177] ss:$8 sm:$0xf] %vm176, %v175
  %s179 = scalar_lea.vmem %s1, 196
  %180 = vst.msk [vmem:[%s179] ss:$8 sm:$0xf0] %vm176, %v175
  %v181 = vld.sshfl [vmem:[%s0] sm:$0xff pattern:$0xb3a29180]
  %182 = vrot.lane.b32.xlu0 %v181, 48
  %v183 = vpop.permute.xlu0 %182
  %vm184 = vcmask 130048
  %s185 = scalar_lea.vmem %s1, 5
  %186 = vst.msk [vmem:[%s185] ss:$8 sm:$0xf] %vm184, %v183
  %s187 = scalar_lea.vmem %s1, 5
  %188 = vst.msk [vmem:[%s187] ss:$8 sm:$0xf0] %vm184, %v183
  %s189 = scalar_lea.vmem %s0, 4
  %v190 = vld.sshfl [vmem:[%s189] sm:$0xff pattern:$0xb3a29180]
  %191 = vrot.lane.b32.xlu0 %v190, 48
  %v192 = vpop.permute.xlu0 %191
  %vm193 = vcmask 130048
  %s194 = scalar_lea.vmem %s1, 69
  %195 = vst.msk [vmem:[%s194] ss:$8 sm:$0xf] %vm193, %v192
  %s196 = scalar_lea.vmem %s1, 69
  %197 = vst.msk [vmem:[%s196] ss:$8 sm:$0xf0] %vm193, %v192
  %s198 = scalar_lea.vmem %s0, 16
  %v199 = vld.sshfl [vmem:[%s198] sm:$0xff pattern:$0xb3a29180]
  %200 = vrot.lane.b32.xlu0 %v199, 48
  %v201 = vpop.permute.xlu0 %200
  %vm202 = vcmask 130048
  %s203 = scalar_lea.vmem %s1, 133
  %204 = vst.msk [vmem:[%s203] ss:$8 sm:$0xf] %vm202, %v201
  %s205 = scalar_lea.vmem %s1, 133
  %206 = vst.msk [vmem:[%s205] ss:$8 sm:$0xf0] %vm202, %v201
  %s207 = scalar_lea.vmem %s0, 20
  %v208 = vld.sshfl [vmem:[%s207] sm:$0xff pattern:$0xb3a29180]
  %209 = vrot.lane.b32.xlu0 %v208, 48
  %v210 = vpop.permute.xlu0 %209
  %vm211 = vcmask 130048
  %s212 = scalar_lea.vmem %s1, 197
  %213 = vst.msk [vmem:[%s212] ss:$8 sm:$0xf] %vm211, %v210
  %s214 = scalar_lea.vmem %s1, 197
  %215 = vst.msk [vmem:[%s214] ss:$8 sm:$0xf0] %vm211, %v210
  %v216 = vld.sshfl [vmem:[%s0] sm:$0xff pattern:$0xb3a29180]
  %217 = vrot.lane.b32.xlu0 %v216, 32
  %v218 = vpop.permute.xlu0 %217
  %vm219 = vcmask 130048
  %s220 = scalar_lea.vmem %s1, 6
  %221 = vst.msk [vmem:[%s220] ss:$8 sm:$0xf] %vm219, %v218
  %s222 = scalar_lea.vmem %s1, 6
  %223 = vst.msk [vmem:[%s222] ss:$8 sm:$0xf0] %vm219, %v218
  %s224 = scalar_lea.vmem %s0, 4
  %v225 = vld.sshfl [vmem:[%s224] sm:$0xff pattern:$0xb3a29180]
  %226 = vrot.lane.b32.xlu0 %v225, 32
  %v227 = vpop.permute.xlu0 %226
  %vm228 = vcmask 130048
  %s229 = scalar_lea.vmem %s1, 70
  %230 = vst.msk [vmem:[%s229] ss:$8 sm:$0xf] %vm228, %v227
  %s231 = scalar_lea.vmem %s1, 70
  %232 = vst.msk [vmem:[%s231] ss:$8 sm:$0xf0] %vm228, %v227
  %s233 = scalar_lea.vmem %s0, 16
  %v234 = vld.sshfl [vmem:[%s233] sm:$0xff pattern:$0xb3a29180]
  %235 = vrot.lane.b32.xlu0 %v234, 32
  %v236 = vpop.permute.xlu0 %235
  %vm237 = vcmask 130048
  %s238 = scalar_lea.vmem %s1, 134
  %239 = vst.msk [vmem:[%s238] ss:$8 sm:$0xf] %vm237, %v236
  %s240 = scalar_lea.vmem %s1, 134
  %241 = vst.msk [vmem:[%s240] ss:$8 sm:$0xf0] %vm237, %v236
  %s242 = scalar_lea.vmem %s0, 20
  %v243 = vld.sshfl [vmem:[%s242] sm:$0xff pattern:$0xb3a29180]
  %244 = vrot.lane.b32.xlu0 %v243, 32
  %v245 = vpop.permute.xlu0 %244
  %vm246 = vcmask 130048
  %s247 = scalar_lea.vmem %s1, 198
  %248 = vst.msk [vmem:[%s247] ss:$8 sm:$0xf] %vm246, %v245
  %s249 = scalar_lea.vmem %s1, 198
  %250 = vst.msk [vmem:[%s249] ss:$8 sm:$0xf0] %vm246, %v245
  %v251 = vld.sshfl [vmem:[%s0] sm:$0xff pattern:$0xb3a29180]
  %252 = vrot.lane.b32.xlu0 %v251, 16
  %v253 = vpop.permute.xlu0 %252
  %vm254 = vcmask 130048
  %s255 = scalar_lea.vmem %s1, 7
  %256 = vst.msk [vmem:[%s255] ss:$8 sm:$0xf] %vm254, %v253
  %s257 = scalar_lea.vmem %s1, 7
  %258 = vst.msk [vmem:[%s257] ss:$8 sm:$0xf0] %vm254, %v253
  %s259 = scalar_lea.vmem %s0, 4
  %v260 = vld.sshfl [vmem:[%s259] sm:$0xff pattern:$0xb3a29180]
  %261 = vrot.lane.b32.xlu0 %v260, 16
  %v262 = vpop.permute.xlu0 %261
  %vm263 = vcmask 130048
  %s264 = scalar_lea.vmem %s1, 71
  %265 = vst.msk [vmem:[%s264] ss:$8 sm:$0xf] %vm263, %v262
  %s266 = scalar_lea.vmem %s1, 71
  %267 = vst.msk [vmem:[%s266] ss:$8 sm:$0xf0] %vm263, %v262
  %s268 = scalar_lea.vmem %s0, 16
  %v269 = vld.sshfl [vmem:[%s268] sm:$0xff pattern:$0xb3a29180]
  %270 = vrot.lane.b32.xlu0 %v269, 16
  %v271 = vpop.permute.xlu0 %270
  %vm272 = vcmask 130048
  %s273 = scalar_lea.vmem %s1, 135
  %274 = vst.msk [vmem:[%s273] ss:$8 sm:$0xf] %vm272, %v271
  %s275 = scalar_lea.vmem %s1, 135
  %276 = vst.msk [vmem:[%s275] ss:$8 sm:$0xf0] %vm272, %v271
  %s277 = scalar_lea.vmem %s0, 20
  %v278 = vld.sshfl [vmem:[%s277] sm:$0xff pattern:$0xb3a29180]
  %279 = vrot.lane.b32.xlu0 %v278, 16
  %v280 = vpop.permute.xlu0 %279
  %vm281 = vcmask 130048
  %s282 = scalar_lea.vmem %s1, 199
  %283 = vst.msk [vmem:[%s282] ss:$8 sm:$0xf] %vm281, %v280
  %s284 = scalar_lea.vmem %s1, 199
  %285 = vst.msk [vmem:[%s284] ss:$8 sm:$0xf0] %vm281, %v280

// kernel: custom-call.2
$region0: #{custom-call.2}
  %s0 = inlined_call_operand.vmem [shape: f32[2,8,16,16], index: 0, kind: input, shape index: {}]
  %s1 = inlined_call_operand.vmem [shape: f32[2,8,16,16], index: 1, kind: input, shape index: {}]
  %s2 = inlined_call_operand.hbm [shape: c64[2,8,16,16], index: 2, kind: output, shape index: {}]
  %s3 = scalar_lea.hbm %s2, 4096
  $region1: #{custom-call.2} parent=0
    #allocation0 [shape = 's32[1]{0}', space=sflag, size = 0x4, scoped, tag = 'scoped memory for custom-call.2']
    %4 = vsyncpa [#allocation0], 0
    %s5 = sshll.u32 %s0, 4
    %s6 = int_to_ptr.vmem [resolvable:$true] %s5
    %8 = dma.vmem_to_hbm [thread:$0]  %s6, 4096, %s2, [#allocation0]
    %9 = dma.done [#allocation0], 4096
    %10 = vsyncpa [#allocation0], 1
  $region2: #{custom-call.2} parent=0
    #allocation1 [shape = 's32[1]{0}', space=sflag, size = 0x4, scoped, tag = 'scoped memory for custom-call.2']
    %11 = vsyncpa [#allocation1], 0
    %s12 = sshll.u32 %s1, 4
    %s13 = int_to_ptr.vmem [resolvable:$true] %s12
    %15 = dma.vmem_to_hbm [thread:$0]  %s13, 4096, %s3, [#allocation1]
    %16 = dma.done [#allocation1], 4096
    %17 = vsyncpa [#allocation1], 1

// kernel: complex_conv.1
$region0: #{complex_conv.1}
  #allocation0 [shape = 'u32[]', space=smem, size = 0x4, offset = 0x4, fixed_abs, tag = 'smem constant byte address 0x4 - core index']
  #allocation1 [shape = 'u32[144,128]{1,0:T(1,128)}', space=vmem, size = 0x12000, scoped, tag = 'internal scratch']
  #allocation2 [shape = 'f32[36,512]{1,0:T(8,128)}', space=vmem, size = 0x14000, scoped, tag = 'scratch operand']
  %s0 = inlined_call_operand.vmem [shape: f32[2,2,4,290], index: 0, kind: input, shape index: {}]
  %s1 = inlined_call_operand.vmem [shape: bf16[2,8,36], index: 1, kind: input, shape index: {}]
  %s2 = inlined_call_operand.vmem [shape: f32[2,2,8,256], index: 2, kind: output, shape index: {}]
  %s3 = sld [smem:[#allocation0]]
  $region41: #{complex_conv.1} parent=0
    _
  %s5 = ssub.s32 1, %s3
  %s6 = scalar_select 0, %s5, %s3
  loop: start=0, step=1, limit=4
  $region2: #{complex_conv.1} parent=0 // loop_pre_header
    _
  $region3: #{complex_conv.1} parent=0 // loop_header
    %s8 = sphi 0, %s12
    %p9 = scmp.ge.s32.totalorder %s8, 4
    %s18 = sphi 0, %s20
    %s21 = sphi 0, %s18
    %s22 = sphi 0, %s21
    %s38 = sphi 0, %s22
    %s44 = sphi 0, %s46
    %s47 = sphi 0, %s44
    %s48 = sphi 0, %s47
    %s64 = sphi 0, %s48
    %s70 = sphi 0, %s72
    %s73 = sphi 0, %s70
    %s74 = sphi 0, %s73
    %s90 = sphi 0, %s74
  $region4: #{complex_conv.1} parent=0 // loop_header_branch
    %11 = sbr.rel (%p9) target = $region8
  $region5: #{complex_conv.1} parent=0 // loop_body
    %s13 = ssub.s32 %s8, 1
    %s14 = ssub.s32 %s8, 2
    %s15 = sadd.s32 %s8, 1
    %s16 = ssub.s32 %s8, %s15
    %p17 = scmp.eq.s32.totalorder %s16, 0
    %s19 = sadd.s32 %s18, 1
    %s20 = scalar_select %p17, %s18, %s19
    %p23 = pneg %p17
    %p24 = scmp.eq.s32.totalorder %s8, 1
    %p25 = por %p23, %p24
    %p26 = scmp.ne.s32.totalorder %s18, %s21
    %p27 = scmp.eq.s32.totalorder %s8, 0
    %p28 = por %p26, %p27
    %p29 = scmp.ne.s32.totalorder %s18, %s21
    %p30 = scmp.eq.s32.totalorder %s13, 1
    %p31 = por %p29, %p30
    %p32 = scmp.ne.s32.totalorder %s21, %s22
    %p33 = scmp.eq.s32.totalorder %s13, 0
    %p34 = por %p32, %p33
    %p35 = scmp.ne.s32.totalorder %s21, %s22
    %p36 = scmp.eq.s32.totalorder %s14, 1
    %p37 = por %p35, %p36
    %p39 = scmp.ne.s32.totalorder %s22, %s38
    %p40 = scmp.eq.s32.totalorder %s14, 0
    %p41 = por %p39, %p40
    %s42 = ssub.s32 %s8, %s15
    %p43 = scmp.eq.s32.totalorder %s42, 0
    %s45 = sadd.s32 %s44, 1
    %s46 = scalar_select %p43, %s44, %s45
    %p49 = pneg %p43
    %p50 = scmp.eq.s32.totalorder %s8, 1
    %p51 = por %p49, %p50
    %p52 = scmp.ne.s32.totalorder %s44, %s47
    %p53 = scmp.eq.s32.totalorder %s8, 0
    %p54 = por %p52, %p53
    %p55 = scmp.ne.s32.totalorder %s44, %s47
    %p56 = scmp.eq.s32.totalorder %s13, 1
    %p57 = por %p55, %p56
    %p58 = scmp.ne.s32.totalorder %s47, %s48
    %p59 = scmp.eq.s32.totalorder %s13, 0
    %p60 = por %p58, %p59
    %p61 = scmp.ne.s32.totalorder %s47, %s48
    %p62 = scmp.eq.s32.totalorder %s14, 1
    %p63 = por %p61, %p62
    %p65 = scmp.ne.s32.totalorder %s48, %s64
    %p66 = scmp.eq.s32.totalorder %s14, 0
    %p67 = por %p65, %p66
    %s68 = ssub.s32 %s8, %s15
    %p69 = scmp.eq.s32.totalorder %s68, 0
    %s71 = sadd.s32 %s70, 1
    %s72 = scalar_select %p69, %s70, %s71
    %p75 = pneg %p69
    %p76 = scmp.eq.s32.totalorder %s8, 1
    %p77 = por %p75, %p76
    %p78 = scmp.ne.s32.totalorder %s70, %s73
    %p79 = scmp.eq.s32.totalorder %s8, 0
    %p80 = por %p78, %p79
    %p81 = scmp.ne.s32.totalorder %s70, %s73
    %p82 = scmp.eq.s32.totalorder %s13, 1
    %p83 = por %p81, %p82
    %p84 = scmp.ne.s32.totalorder %s73, %s74
    %p85 = scmp.eq.s32.totalorder %s13, 0
    %p86 = por %p84, %p85
    %p87 = scmp.ne.s32.totalorder %s73, %s74
    %p88 = scmp.eq.s32.totalorder %s14, 1
    %p89 = por %p87, %p88
    %p91 = scmp.ne.s32.totalorder %s74, %s90
    %p92 = scmp.eq.s32.totalorder %s14, 0
    %p93 = por %p91, %p92
    %p94 = scmp.le.s32.totalorder 1, %s8
    %p95 = scmp.lt.s32.totalorder %s8, 3
    %p96 = pnand %p94, %p95
    %p97 = pneg %p96
    // Predicated region
    $region9: #{complex_conv.1} parent=5 // pred_check
      _
    $region10: #{complex_conv.1} parent=5 // pred_check_branch
      %99 = sbr.rel (%p96) target = $region12
    $region11: #{complex_conv.1} parent=5 // pred_region
      %s100 = ssub.s32 %s8, 1
    $region12: #{complex_conv.1} parent=5 // pred_fallthru
      _
    %p101 = scmp.lt.s32.totalorder %s8, 2
    // Predicated region
    $region13: #{complex_conv.1} parent=5 // pred_check
      %p102 = pneg %p101
    $region14: #{complex_conv.1} parent=5 // pred_check_branch
      %104 = sbr.rel (%p102) target = $region16
    $region15: #{complex_conv.1} parent=5 // pred_region
      // Predicated region
      $region17: #{complex_conv.1} parent=15 // pred_check
        %p105 = pneg %p28
      $region18: #{complex_conv.1} parent=15 // pred_check_branch
        %107 = sbr.rel (%p105) target = $region20
      $region19: #{complex_conv.1} parent=15 // pred_region
        %p108 = scmp.lt.s32.totalorder %s8, 1
        %s109 = scalar_select %p108, %s8, 1
        %s110 = smul.addr %s109, 6
        %s111 = smul.addr %s110, 4
        %s112 = scalar_lea.vmem %s0, %s111
      $region20: #{complex_conv.1} parent=15 // pred_fallthru
        _
      // Predicated region
      $region21: #{complex_conv.1} parent=15 // pred_check
        %p113 = pneg %p54
      $region22: #{complex_conv.1} parent=15 // pred_check_branch
        %115 = sbr.rel (%p113) target = $region24
      $region23: #{complex_conv.1} parent=15 // pred_region
        %p116 = scmp.lt.s32.totalorder %s8, 1
        %s117 = scalar_select %p116, %s8, 1
        %s118 = smul.addr %s117, 4
        %s119 = scalar_lea.vmem %s1, %s118
      $region24: #{complex_conv.1} parent=15 // pred_fallthru
        _
    $region16: #{complex_conv.1} parent=5 // pred_fallthru
      _
    %p120 = scmp.le.s32.totalorder 1, %s8
    %p121 = scmp.lt.s32.totalorder %s8, 3
    %p122 = pnand %p120, %p121
    %p123 = pneg %p122
    // Predicated region
    $region25: #{complex_conv.1} parent=5 // pred_check
      _
    $region26: #{complex_conv.1} parent=5 // pred_check_branch
      %125 = sbr.rel (%p122) target = $region28
    $region27: #{complex_conv.1} parent=5 // pred_region
      %s126 = ssub.s32 %s8, 1
      %p127 = scmp.lt.s32.totalorder %s13, 1
      %s128 = scalar_select %p127, %s13, 1
      %s129 = smul.addr %s128, 6
      %s130 = smul.addr %s129, 4
      %s131 = scalar_lea.vmem %s0, %s130
      %p132 = pneg %p34
      %p133 = pneg %p31
      %p134 = scmp.lt.s32.totalorder %s13, 1
      %s135 = scalar_select %p134, %s13, 1
      %s136 = smul.addr %s135, 4
      %s137 = scalar_lea.vmem %s1, %s136
      %p138 = pneg %p60
      %p139 = pneg %p57
      %p140 = pneg %p86
      %p141 = pneg %p83
      %p142 = scmp.lt.s32.totalorder %s13, 1
      %s143 = scalar_select %p142, %s13, 1
      %s144 = smul.addr %s143, 4
      %s145 = smul.addr %s144, 8
      %s146 = scalar_lea.vmem %s2, %s145
      %p147 = scmp.lt.s32.totalorder %s13, 1
      %s148 = scalar_select %p147, %s13, 1
      %s149 = smul.addr %s148, 6
      %s150 = smul.addr %s149, 4
      %s151 = scalar_lea.vmem %s0, %s150
      %p152 = scmp.lt.s32.totalorder %s13, 1
      %s153 = scalar_select %p152, %s13, 1
      %s154 = smul.addr %s153, 4
      %s155 = scalar_lea.vmem %s1, %s154
      %p156 = scmp.lt.s32.totalorder %s13, 1
      %s157 = scalar_select %p156, %s13, 1
      %s158 = smul.addr %s157, 4
      %s159 = smul.addr %s158, 8
      %s160 = scalar_lea.vmem %s2, %s159
      %v162 = vlaneseq
      %v163 = vand.u32 %v162, 127
      %v164 = vadd.s32 %v163, 128
      %vm165 = vcmp.lt.s32.totalorder %v163, 0
      %v166 = vsub.s32 0, %v163
      %v167 = vsel %vm165, %v166, %v163
      %v168 = vshrl.u32 %v167, 4
      %v169 = vand.u32 %v167, 15
      %v170 = vsub.s32 0, %v169
      %v171 = vsel %vm165, %v170, %v169
      %vm172 = vcmp.lt.s32.totalorder %v164, 0
      %v173 = vsub.s32 0, %v164
      %v174 = vsel %vm172, %v173, %v164
      %v175 = vshrl.u32 %v174, 4
      %v176 = vand.u32 %v174, 15
      %v177 = vsub.s32 0, %v176
      %v178 = vsel %vm172, %v177, %v176
      %vm179 = vcmp.ne.s32.totalorder %v171, 0
      %vm180 = vcmp.ne.s32.totalorder %v178, 0
      %vm181 = vcmp.lt.s32.totalorder %v171, 0
      %vm182 = vcmp.lt.s32.totalorder %v178, 0
      %vm183 = vmand %vm181, %vm179
      %vm184 = vmand %vm182, %vm180
      %v185 = vadd.s32 %v171, 16
      %v186 = vadd.s32 %v178, 16
      %v187 = vsel %vm183, %v185, %v171
      %v188 = vsel %vm184, %v186, %v178
      %vm189 = vcmp.ge.s32.totalorder %v187, 1
      %vm190 = vcmp.ge.s32.totalorder %v188, 1
      %vm191 = vcmp.lt.s32.totalorder %v187, 16
      %vm192 = vcmp.lt.s32.totalorder %v188, 16
      %vm193 = vmand %vm189, %vm191
      %vm194 = vmand %vm190, %vm192
      %vm195 = vcmp.ge.s32.totalorder %v187, 0
      %vm196 = vcmp.ge.s32.totalorder %v188, 0
      %vm197 = vcmp.lt.s32.totalorder %v187, 15
      %vm198 = vcmp.lt.s32.totalorder %v188, 15
      %vm199 = vmand %vm195, %vm197
      %vm200 = vmand %vm196, %vm198
      %v201 = vld [vmem:[%s151] sm:$0xff]
      %v202 = vsel %vm193, 1, 0
      %v203 = vsel %vm194, 1, 0
      %vm204 = vcmp.eq.s32.totalorder %v202, 1
      %vm205 = vcmp.eq.s32.totalorder %v203, 1
      %v207 = vcombine.high %v201, %v201
      %v209 = vsel %vm204, %v201, 0.0
      %v210 = vsel %vm205, %v207, 0.0
      %211 = vst [vmem:[#allocation2] sm:$0xf] %v209
      %212 = vst [vmem:[#allocation2 + $0x8] sm:$0xf] %v210
      %v213 = vld [vmem:[%s151] sm:$0xff]
      %v214 = vld [vmem:[%s151 + $0x8] sm:$0xf]
      %v217 = vcombine.low %v213, %v213
      %v218 = vcombine.low %v214, %v214
      %219 = vrot.lane.b32.xlu0 %v217, 127
      %v220 = vpop.permute.xlu0 %219
      %221 = vrot.lane.b32.xlu0 %v213, 127
      %v222 = vpop.permute.xlu0 %221
      %223 = vrot.lane.b32.xlu0 %v218, 127
      %v224 = vpop.permute.xlu0 %223
      %vm225 = vcmask 1039360
      %v226 = vsel %vm225, %v220, %v222
      %v227 = vsel %vm225, %v222, %v224
      %230 = vst [vmem:[#allocation2] sm:$0xf0] %v226
      %231 = vst [vmem:[#allocation2 + $0x8] sm:$0xf0] %v227
      %v232 = vld [vmem:[%s151] sm:$0xff]
      %v233 = vld [vmem:[%s151 + $0x8] sm:$0xf]
      %v234 = vsel %vm199, 1, 0
      %v235 = vsel %vm200, 1, 0
      %vm236 = vcmp.eq.s32.totalorder %v234, 1
      %vm237 = vcmp.eq.s32.totalorder %v235, 1
      %v240 = vcombine.high %v232, %v232
      %241 = vrot.lane.b32.xlu0 %v232, 126
      %v242 = vpop.permute.xlu0 %241
      %243 = vrot.lane.b32.xlu0 %v240, 126
      %v244 = vpop.permute.xlu0 %243
      %245 = vrot.lane.b32.xlu0 %v233, 126
      %v246 = vpop.permute.xlu0 %245
      %vm247 = vcmask 1031168
      %v248 = vsel %vm247, %v242, %v244
      %v249 = vsel %vm247, %v244, %v246
      %v252 = vsel %vm236, %v248, 0.0
      %v253 = vsel %vm237, %v249, 0.0
      %254 = vst [vmem:[#allocation2 + $0x20] sm:$0xf] %v252
      %255 = vst [vmem:[#allocation2 + $0x28] sm:$0xf] %v253
      %v256 = vld [vmem:[%s151] sm:$0xff]
      %v257 = vld [vmem:[%s151 + $0x8] sm:$0xf]
      %v260 = vcombine.high %v256, %v256
      %261 = vrot.lane.b32.xlu0 %v256, 112
      %v262 = vpop.permute.xlu0 %261
      %263 = vrot.lane.b32.xlu0 %v260, 112
      %v264 = vpop.permute.xlu0 %263
      %265 = vrot.lane.b32.xlu0 %v257, 112
      %v266 = vpop.permute.xlu0 %265
      %vm267 = vcmask 916480
      %v268 = vsel %vm267, %v262, %v264
      %v269 = vsel %vm267, %v264, %v266
      %v272 = vsel %vm204, %v268, 0.0
      %v273 = vsel %vm205, %v269, 0.0
      %v276 = vrot.slane %v272, 4
      %v277 = vrot.slane %v273, 4
      %280 = vst [vmem:[#allocation2 + $0x20] sm:$0xf0] %v276
      %281 = vst [vmem:[#allocation2 + $0x28] sm:$0xf0] %v277
      %v282 = vld [vmem:[%s151] sm:$0xff]
      %v283 = vld [vmem:[%s151 + $0x8] sm:$0xf]
      %v286 = vcombine.high %v282, %v282
      %287 = vrot.lane.b32.xlu0 %v282, 111
      %v288 = vpop.permute.xlu0 %287
      %289 = vrot.lane.b32.xlu0 %v286, 111
      %v290 = vpop.permute.xlu0 %289
      %291 = vrot.lane.b32.xlu0 %v283, 111
      %v292 = vpop.permute.xlu0 %291
      %vm293 = vcmask 908288
      %v294 = vsel %vm293, %v288, %v290
      %v295 = vsel %vm293, %v290, %v292
      %298 = vst [vmem:[#allocation2 + $0x40] sm:$0xf] %v294
      %299 = vst [vmem:[#allocation2 + $0x48] sm:$0xf] %v295
      %v300 = vld [vmem:[%s151] sm:$0xff]
      %v301 = vld [vmem:[%s151 + $0x8] sm:$0xf]
      %v304 = vcombine.high %v300, %v300
      %305 = vrot.lane.b32.xlu0 %v300, 110
      %v306 = vpop.permute.xlu0 %305
      %307 = vrot.lane.b32.xlu0 %v304, 110
      %v308 = vpop.permute.xlu0 %307
      %309 = vrot.lane.b32.xlu0 %v301, 110
      %v310 = vpop.permute.xlu0 %309
      %vm311 = vcmask 900096
      %v312 = vsel %vm311, %v306, %v308
      %v313 = vsel %vm311, %v308, %v310
      %v316 = vsel %vm236, %v312, 0.0
      %v317 = vsel %vm237, %v313, 0.0
      %v320 = vrot.slane %v316, 4
      %v321 = vrot.slane %v317, 4
      %324 = vst [vmem:[#allocation2 + $0x40] sm:$0xf0] %v320
      %325 = vst [vmem:[#allocation2 + $0x48] sm:$0xf0] %v321
      %v326 = vld [vmem:[%s151] sm:$0xff]
      %v327 = vld [vmem:[%s151 + $0x8] sm:$0xf]
      %v330 = vcombine.high %v326, %v326
      %331 = vrot.lane.b32.xlu0 %v326, 96
      %v332 = vpop.permute.xlu0 %331
      %333 = vrot.lane.b32.xlu0 %v330, 96
      %v334 = vpop.permute.xlu0 %333
      %335 = vrot.lane.b32.xlu0 %v327, 96
      %v336 = vpop.permute.xlu0 %335
      %vm337 = vcmask 785408
      %v338 = vsel %vm337, %v332, %v334
      %v339 = vsel %vm337, %v334, %v336
      %v342 = vsel %vm204, %v338, 0.0
      %v343 = vsel %vm205, %v339, 0.0
      %344 = vst [vmem:[#allocation2 + $0x60] sm:$0xf] %v342
      %345 = vst [vmem:[#allocation2 + $0x68] sm:$0xf] %v343
      %v346 = vld [vmem:[%s151] sm:$0xff]
      %v347 = vld [vmem:[%s151 + $0x8] sm:$0xf]
      %v350 = vcombine.low %v346, %v346
      %v351 = vcombine.low %v347, %v347
      %352 = vrot.lane.b32.xlu0 %v350, 95
      %v353 = vpop.permute.xlu0 %352
      %354 = vrot.lane.b32.xlu0 %v346, 95
      %v355 = vpop.permute.xlu0 %354
      %356 = vrot.lane.b32.xlu0 %v351, 95
      %v357 = vpop.permute.xlu0 %356
      %vm358 = vcmask 777216
      %v359 = vsel %vm358, %v353, %v355
      %v360 = vsel %vm358, %v355, %v357
      %363 = vst [vmem:[#allocation2 + $0x60] sm:$0xf0] %v359
      %364 = vst [vmem:[#allocation2 + $0x68] sm:$0xf0] %v360
      %v365 = vld [vmem:[%s151] sm:$0xff]
      %v366 = vld [vmem:[%s151 + $0x8] sm:$0xf]
      %v369 = vcombine.high %v365, %v365
      %370 = vrot.lane.b32.xlu0 %v365, 94
      %v371 = vpop.permute.xlu0 %370
      %372 = vrot.lane.b32.xlu0 %v369, 94
      %v373 = vpop.permute.xlu0 %372
      %374 = vrot.lane.b32.xlu0 %v366, 94
      %v375 = vpop.permute.xlu0 %374
      %vm376 = vcmask 769024
      %v377 = vsel %vm376, %v371, %v373
      %v378 = vsel %vm376, %v373, %v375
      %v381 = vsel %vm236, %v377, 0.0
      %v382 = vsel %vm237, %v378, 0.0
      %383 = vst [vmem:[#allocation2 + $0x80] sm:$0xf] %v381
      %384 = vst [vmem:[#allocation2 + $0x88] sm:$0xf] %v382
      %s385 = scalar_lea.vmem %s151, 12
      %v386 = vld [vmem:[%s385] sm:$0xff]
      %v388 = vcombine.high %v386, %v386
      %v390 = vsel %vm204, %v386, 0.0
      %v391 = vsel %vm205, %v388, 0.0
      %392 = vst [vmem:[#allocation2 + $0x10] sm:$0xf] %v390
      %393 = vst [vmem:[#allocation2 + $0x18] sm:$0xf] %v391
      %v394 = vld [vmem:[%s385] sm:$0xff]
      %v395 = vld [vmem:[%s385 + $0x8] sm:$0xf]
      %v398 = vcombine.low %v394, %v394
      %v399 = vcombine.low %v395, %v395
      %400 = vrot.lane.b32.xlu0 %v398, 127
      %v401 = vpop.permute.xlu0 %400
      %402 = vrot.lane.b32.xlu0 %v394, 127
      %v403 = vpop.permute.xlu0 %402
      %404 = vrot.lane.b32.xlu0 %v399, 127
      %v405 = vpop.permute.xlu0 %404
      %v406 = vsel %vm225, %v401, %v403
      %v407 = vsel %vm225, %v403, %v405
      %410 = vst [vmem:[#allocation2 + $0x10] sm:$0xf0] %v406
      %411 = vst [vmem:[#allocation2 + $0x18] sm:$0xf0] %v407
      %v412 = vld [vmem:[%s385] sm:$0xff]
      %v413 = vld [vmem:[%s385 + $0x8] sm:$0xf]
      %v416 = vcombine.high %v412, %v412
      %417 = vrot.lane.b32.xlu0 %v412, 126
      %v418 = vpop.permute.xlu0 %417
      %419 = vrot.lane.b32.xlu0 %v416, 126
      %v420 = vpop.permute.xlu0 %419
      %421 = vrot.lane.b32.xlu0 %v413, 126
      %v422 = vpop.permute.xlu0 %421
      %v423 = vsel %vm247, %v418, %v420
      %v424 = vsel %vm247, %v420, %v422
      %v427 = vsel %vm236, %v423, 0.0
      %v428 = vsel %vm237, %v424, 0.0
      %429 = vst [vmem:[#allocation2 + $0x30] sm:$0xf] %v427
      %430 = vst [vmem:[#allocation2 + $0x38] sm:$0xf] %v428
      %v431 = vld [vmem:[%s385] sm:$0xff]
      %v432 = vld [vmem:[%s385 + $0x8] sm:$0xf]
      %v435 = vcombine.high %v431, %v431
      %436 = vrot.lane.b32.xlu0 %v431, 112
      %v437 = vpop.permute.xlu0 %436
      %438 = vrot.lane.b32.xlu0 %v435, 112
      %v439 = vpop.permute.xlu0 %438
      %440 = vrot.lane.b32.xlu0 %v432, 112
      %v441 = vpop.permute.xlu0 %440
      %v442 = vsel %vm267, %v437, %v439
      %v443 = vsel %vm267, %v439, %v441
      %v446 = vsel %vm204, %v442, 0.0
      %v447 = vsel %vm205, %v443, 0.0
      %v450 = vrot.slane %v446, 4
      %v451 = vrot.slane %v447, 4
      %454 = vst [vmem:[#allocation2 + $0x30] sm:$0xf0] %v450
      %455 = vst [vmem:[#allocation2 + $0x38] sm:$0xf0] %v451
      %v456 = vld [vmem:[%s385] sm:$0xff]
      %v457 = vld [vmem:[%s385 + $0x8] sm:$0xf]
      %v460 = vcombine.high %v456, %v456
      %461 = vrot.lane.b32.xlu0 %v456, 111
      %v462 = vpop.permute.xlu0 %461
      %463 = vrot.lane.b32.xlu0 %v460, 111
      %v464 = vpop.permute.xlu0 %463
      %465 = vrot.lane.b32.xlu0 %v457, 111
      %v466 = vpop.permute.xlu0 %465
      %v467 = vsel %vm293, %v462, %v464
      %v468 = vsel %vm293, %v464, %v466
      %471 = vst [vmem:[#allocation2 + $0x50] sm:$0xf] %v467
      %472 = vst [vmem:[#allocation2 + $0x58] sm:$0xf] %v468
      %v473 = vld [vmem:[%s385] sm:$0xff]
      %v474 = vld [vmem:[%s385 + $0x8] sm:$0xf]
      %v477 = vcombine.high %v473, %v473
      %478 = vrot.lane.b32.xlu0 %v473, 110
      %v479 = vpop.permute.xlu0 %478
      %480 = vrot.lane.b32.xlu0 %v477, 110
      %v481 = vpop.permute.xlu0 %480
      %482 = vrot.lane.b32.xlu0 %v474, 110
      %v483 = vpop.permute.xlu0 %482
      %v484 = vsel %vm311, %v479, %v481
      %v485 = vsel %vm311, %v481, %v483
      %v488 = vsel %vm236, %v484, 0.0
      %v489 = vsel %vm237, %v485, 0.0
      %v492 = vrot.slane %v488, 4
      %v493 = vrot.slane %v489, 4
      %496 = vst [vmem:[#allocation2 + $0x50] sm:$0xf0] %v492
      %497 = vst [vmem:[#allocation2 + $0x58] sm:$0xf0] %v493
      %v498 = vld [vmem:[%s385] sm:$0xff]
      %v499 = vld [vmem:[%s385 + $0x8] sm:$0xf]
      %v502 = vcombine.high %v498, %v498
      %503 = vrot.lane.b32.xlu0 %v498, 96
      %v504 = vpop.permute.xlu0 %503
      %505 = vrot.lane.b32.xlu0 %v502, 96
      %v506 = vpop.permute.xlu0 %505
      %507 = vrot.lane.b32.xlu0 %v499, 96
      %v508 = vpop.permute.xlu0 %507
      %v509 = vsel %vm337, %v504, %v506
      %v510 = vsel %vm337, %v506, %v508
      %v513 = vsel %vm204, %v509, 0.0
      %v514 = vsel %vm205, %v510, 0.0
      %515 = vst [vmem:[#allocation2 + $0x70] sm:$0xf] %v513
      %516 = vst [vmem:[#allocation2 + $0x78] sm:$0xf] %v514
      %v517 = vld [vmem:[%s385] sm:$0xff]
      %v518 = vld [vmem:[%s385 + $0x8] sm:$0xf]
      %v521 = vcombine.low %v517, %v517
      %v522 = vcombine.low %v518, %v518
      %523 = vrot.lane.b32.xlu0 %v521, 95
      %v524 = vpop.permute.xlu0 %523
      %525 = vrot.lane.b32.xlu0 %v517, 95
      %v526 = vpop.permute.xlu0 %525
      %527 = vrot.lane.b32.xlu0 %v522, 95
      %v528 = vpop.permute.xlu0 %527
      %v529 = vsel %vm358, %v524, %v526
      %v530 = vsel %vm358, %v526, %v528
      %533 = vst [vmem:[#allocation2 + $0x70] sm:$0xf0] %v529
      %534 = vst [vmem:[#allocation2 + $0x78] sm:$0xf0] %v530
      %v535 = vld [vmem:[%s385] sm:$0xff]
      %v536 = vld [vmem:[%s385 + $0x8] sm:$0xf]
      %v539 = vcombine.high %v535, %v535
      %540 = vrot.lane.b32.xlu0 %v535, 94
      %v541 = vpop.permute.xlu0 %540
      %542 = vrot.lane.b32.xlu0 %v539, 94
      %v543 = vpop.permute.xlu0 %542
      %544 = vrot.lane.b32.xlu0 %v536, 94
      %v545 = vpop.permute.xlu0 %544
      %v546 = vsel %vm376, %v541, %v543
      %v547 = vsel %vm376, %v543, %v545
      %v550 = vsel %vm236, %v546, 0.0
      %v551 = vsel %vm237, %v547, 0.0
      %552 = vst [vmem:[#allocation2 + $0x90] sm:$0xf] %v550
      %553 = vst [vmem:[#allocation2 + $0x98] sm:$0xf] %v551
      %v554 = vld [vmem:[%s155] sm:$0xf]
      %v555 = vld [vmem:[#allocation2] sm:$0xff]
      %v556 = vld [vmem:[#allocation2 + $0x8] sm:$0xff]
      %v557 = vld [vmem:[#allocation2 + $0x10] sm:$0xff]
      %v558 = vld [vmem:[#allocation2 + $0x18] sm:$0xff]
      %v559 = vld [vmem:[#allocation2 + $0x20] sm:$0xff]
      %v560 = vld [vmem:[#allocation2 + $0x28] sm:$0xff]
      %v561 = vld [vmem:[#allocation2 + $0x30] sm:$0xff]
      %v562 = vld [vmem:[#allocation2 + $0x38] sm:$0xff]
      %v563 = vld [vmem:[#allocation2 + $0x40] sm:$0xff]
      %v564 = vld [vmem:[#allocation2 + $0x48] sm:$0xff]
      %v565 = vld [vmem:[#allocation2 + $0x50] sm:$0xff]
      %v566 = vld [vmem:[#allocation2 + $0x58] sm:$0xff]
      %v567 = vld [vmem:[#allocation2 + $0x60] sm:$0xff]
      %v568 = vld [vmem:[#allocation2 + $0x68] sm:$0xff]
      %v569 = vld [vmem:[#allocation2 + $0x70] sm:$0xff]
      %v570 = vld [vmem:[#allocation2 + $0x78] sm:$0xff]
      %v571 = vld [vmem:[#allocation2 + $0x80] sm:$0xf]
      %v572 = vld [vmem:[#allocation2 + $0x88] sm:$0xf]
      %v573 = vld [vmem:[#allocation2 + $0x90] sm:$0xf]
      %v574 = vld [vmem:[#allocation2 + $0x98] sm:$0xf]
      %v575 = vpack.c.bf16 %v559, %v555
      %v576 = vpack.c.bf16 %v560, %v556
      %v577 = vpack.c.bf16 %v561, %v557
      %v578 = vpack.c.bf16 %v562, %v558
      %v579 = vpack.c.bf16 %v567, %v563
      %v580 = vpack.c.bf16 %v568, %v564
      %v581 = vpack.c.bf16 %v569, %v565
      %v582 = vpack.c.bf16 %v570, %v566
      %v583 = vpack.c.bf16 %v571, %v571
      %v584 = vpack.c.bf16 %v572, %v572
      %v585 = vpack.c.bf16 %v573, %v573
      %v586 = vpack.c.bf16 %v574, %v574
      %vm587 = vcmask 293888
      %v589 = vsel %vm587, %v554, 0
      %vm591 = vcmask 1041408
      %v593 = vsel %vm591, %v583, 0
      %v596 = vsel %vm591, %v584, 0
      %v599 = vsel %vm591, %v585, 0
      %v602 = vsel %vm591, %v586, 0
      %604 = vmatprep.subr.bf16.mxu0 %v576
      %605 = vmatpush1.bf16.msra.mxu0 %v575
      %606 = vmatprep.subr.bf16.mxu0 %v580
      %607 = vmatpush1.bf16.msra.mxu0 %v579
      %608 = vmatprep.subr.bf16.mxu0 %v596
      %609 = vmatpush1.bf16.msra.mxu0 %v593
      %610 = vmatprep.subr.bf16.mxu0 0
      %611 = vmatpush1.bf16.msra.mxu0 0
      %612 = vmatprep.subr.bf16.mxu0 0
      %613 = vmatpush1.bf16.msra.mxu0 0
      %614 = vmatprep.subr.bf16.mxu0 0
      %615 = vmatpush1.bf16.msra.mxu0 0
      %616 = vmatprep.subr.bf16.mxu0 0
      %617 = vmatpush1.bf16.msra.mxu0 0
      %618 = vmatprep.subr.bf16.mxu0 0
      %619 = vmatpush1.bf16.msra.mxu0 0
      %620 = vmatprep.subr.bf16.mxu0 0
      %621 = vmatpush1.bf16.msra.mxu0 0
      %622 = vmatprep.subr.bf16.mxu0 0
      %623 = vmatpush1.bf16.msra.mxu0 0
      %624 = vmatprep.subr.bf16.mxu0 0
      %625 = vmatpush1.bf16.msra.mxu0 0
      %626 = vmatprep.subr.bf16.mxu0 0
      %627 = vmatpush1.bf16.msra.mxu0 0
      %628 = vmatprep.subr.bf16.mxu0 0
      %629 = vmatpush1.bf16.msra.mxu0 0
      %630 = vmatprep.subr.bf16.mxu0 0
      %631 = vmatpush1.bf16.msra.mxu0 0
      %632 = vmatprep.subr.bf16.mxu0 0
      %633 = vmatpush1.bf16.msra.mxu0 0
      %634 = vmatprep.subr.bf16.mxu0 0
      %635 = vmatpush1.bf16.msra.mxu0 0
      %636 = vmatprep.mubr.bf16.mxu0 0
      %637 = vmatmul.mubr.bf16.gmra.mrb[0].mxu0 %v589
      %v638 = vpop.f32.mrb[0].mxu0
      %v639 = vadd.f32 0.0, %v638
      %v640 = vpop.f32.mrb[0].mxu0
      %v641 = vadd.f32 0.0, %v640
      %v642 = vpop.f32.mrb[0].mxu0
      %v643 = vpop.f32.mrb[0].mxu0
      %644 = vdwg.mxu0
      %645 = vmatprep.subr.bf16.mxu0 %v578
      %646 = vmatpush1.bf16.msra.mxu0 %v577
      %647 = vmatprep.subr.bf16.mxu0 %v582
      %648 = vmatpush1.bf16.msra.mxu0 %v581
      %649 = vmatprep.subr.bf16.mxu0 %v602
      %650 = vmatpush1.bf16.msra.mxu0 %v599
      %651 = vmatprep.subr.bf16.mxu0 0
      %652 = vmatpush1.bf16.msra.mxu0 0
      %653 = vmatprep.subr.bf16.mxu0 0
      %654 = vmatpush1.bf16.msra.mxu0 0
      %655 = vmatprep.subr.bf16.mxu0 0
      %656 = vmatpush1.bf16.msra.mxu0 0
      %657 = vmatprep.subr.bf16.mxu0 0
      %658 = vmatpush1.bf16.msra.mxu0 0
      %659 = vmatprep.subr.bf16.mxu0 0
      %660 = vmatpush1.bf16.msra.mxu0 0
      %661 = vmatprep.subr.bf16.mxu0 0
      %662 = vmatpush1.bf16.msra.mxu0 0
      %663 = vmatprep.subr.bf16.mxu0 0
      %664 = vmatpush1.bf16.msra.mxu0 0
      %665 = vmatprep.subr.bf16.mxu0 0
      %666 = vmatpush1.bf16.msra.mxu0 0
      %667 = vmatprep.subr.bf16.mxu0 0
      %668 = vmatpush1.bf16.msra.mxu0 0
      %669 = vmatprep.subr.bf16.mxu0 0
      %670 = vmatpush1.bf16.msra.mxu0 0
      %671 = vmatprep.subr.bf16.mxu0 0
      %672 = vmatpush1.bf16.msra.mxu0 0
      %673 = vmatprep.subr.bf16.mxu0 0
      %674 = vmatpush1.bf16.msra.mxu0 0
      %675 = vmatprep.subr.bf16.mxu0 0
      %676 = vmatpush1.bf16.msra.mxu0 0
      %677 = vmatprep.mubr.bf16.mxu0 0
      %678 = vmatmul.mubr.bf16.gmra.mrb[0].mxu0 %v589
      %v679 = vpop.f32.mrb[0].mxu0
      %v680 = vadd.f32 0.0, %v679
      %v681 = vpop.f32.mrb[0].mxu0
      %v682 = vadd.f32 0.0, %v681
      %v683 = vpop.f32.mrb[0].mxu0
      %v684 = vpop.f32.mrb[0].mxu0
      %685 = vdwg.mxu0
      %v686 = vadd.f32 %v639, %v641
      %687 = vadd.xlane.f32.xlu0 %v686
      %v688 = vpop.xlane.xlu0 %687
      %v689 = vmul.f32 %v688, 0.00390625
      %v690 = vsub.f32 %v639, %v689
      %v691 = vsub.f32 %v641, %v689
      %v692 = vmul.f32 %v690, %v690
      %v693 = vmul.f32 %v691, %v691
      %v694 = vadd.f32 %v692, %v693
      %695 = vadd.xlane.f32.xlu0 %v694
      %v696 = vpop.xlane.xlu0 %695
      %v697 = vmul.f32 %v696, 0.00390625
      %v698 = vadd.f32 %v697, 1e-05
      %v699 = vrsqrt.pop %v698
      %v700 = vmul.f32 %v690, %v699
      %v701 = vmul.f32 %v691, %v699
      %702 = vst [vmem:[%s160] sm:$0xff] %v700
      %703 = vst [vmem:[%s160 + $0x8] sm:$0xff] %v701
      %v704 = vadd.f32 %v680, %v682
      %705 = vadd.xlane.f32.xlu0 %v704
      %v706 = vpop.xlane.xlu0 %705
      %v707 = vmul.f32 %v706, 0.00390625
      %v708 = vsub.f32 %v680, %v707
      %v709 = vsub.f32 %v682, %v707
      %v710 = vmul.f32 %v708, %v708
      %v711 = vmul.f32 %v709, %v709
      %v712 = vadd.f32 %v710, %v711
      %713 = vadd.xlane.f32.xlu0 %v712
      %v714 = vpop.xlane.xlu0 %713
      %v715 = vmul.f32 %v714, 0.00390625
      %v716 = vadd.f32 %v715, 1e-05
      %v717 = vrsqrt.pop %v716
      %v718 = vmul.f32 %v708, %v717
      %v719 = vmul.f32 %v709, %v717
      %s720 = scalar_lea.vmem %s160, 16
      %721 = vst [vmem:[%s720] sm:$0xff] %v718
      %722 = vst [vmem:[%s720 + $0x8] sm:$0xff] %v719
      %p723 = scmp.lt.s32.totalorder %s13, 1
      %s724 = scalar_select %p723, %s13, 1
      %s725 = smul.addr %s724, 4
      %s726 = smul.addr %s725, 8
      %s727 = scalar_lea.vmem %s2, %s726
      // Predicated region
      $region29: #{complex_conv.1} parent=27 // pred_check
        %p728 = pneg %p83
      $region30: #{complex_conv.1} parent=27 // pred_check_branch
        %730 = sbr.rel (%p728) target = $region32
      $region31: #{complex_conv.1} parent=27 // pred_region
        _
      $region32: #{complex_conv.1} parent=27 // pred_fallthru
        _
    $region28: #{complex_conv.1} parent=5 // pred_fallthru
      _
    %p731 = scmp.le.s32.totalorder 2, %s8
    // Predicated region
    $region33: #{complex_conv.1} parent=5 // pred_check
      %p732 = pneg %p731
    $region34: #{complex_conv.1} parent=5 // pred_check_branch
      %734 = sbr.rel (%p732) target = $region36
    $region35: #{complex_conv.1} parent=5 // pred_region
      %s735 = ssub.s32 %s8, 2
      // Predicated region
      $region37: #{complex_conv.1} parent=35 // pred_check
        %p736 = pneg %p89
      $region38: #{complex_conv.1} parent=35 // pred_check_branch
        %738 = sbr.rel (%p736) target = $region40
      $region39: #{complex_conv.1} parent=35 // pred_region
        %p739 = scmp.lt.s32.totalorder %s14, 1
        %s740 = scalar_select %p739, %s14, 1
        %s741 = smul.addr %s740, 4
        %s742 = smul.addr %s741, 8
        %s743 = scalar_lea.vmem %s2, %s742
      $region40: #{complex_conv.1} parent=35 // pred_fallthru
        _
    $region36: #{complex_conv.1} parent=5 // pred_fallthru
      _
  $region6: #{complex_conv.1} parent=0 // loop_footer
    %s12 = sadd.s32 1, %s8
  $region7: #{complex_conv.1} parent=0 // loop_footer_branch
    %7 = sbr.rel target = $region3
  $region8: #{complex_conv.1} parent=0 // loop_exit
    _

</llo_original>
